<compile_context>
chip_gen: v7x
topology: tpu7x:2x2x1
jax: 0.10.0
libtpu: 0.0.40
codegen_flags: <defaults>
</compile_context>

<pallas_src>
import functools

import jax
import jax.numpy as jnp
import numpy as np
from jax import lax
from jax.experimental import pallas as pl
from jax.experimental.pallas import tpu as pltpu

dimension = 8          # DCGAN base width (kept small for the synthetic test)
BN_EPS = 1e-5
LEAKY_SLOPE = 0.2


# --------------------------------------------------------------------------
# Fused Pallas kernels: [prologue affine + LeakyReLU] -> MXU matmul -> BN stats
# --------------------------------------------------------------------------
def _prologue_dot(p_ref, w_ref, sc_ref, sh_ref, *, apply_affine, apply_leaky):
    # p_ref : (tm, K) bf16 im2col patches
    # w_ref : (K, Cout) bf16 weights (resident across the M grid)
    # sc/sh : (1, K) f32 per-column affine (prev BatchNorm folded, tiled k*k)
    if apply_affine or apply_leaky:
        y = p_ref[...].astype(jnp.float32)
        if apply_affine:
            y = y * sc_ref[...] + sh_ref[...]
        if apply_leaky:
            y = jnp.where(y >= 0.0, y, LEAKY_SLOPE * y)
        y = y.astype(jnp.bfloat16)
    else:
        y = p_ref[...]
    return jnp.dot(y, w_ref[...], preferred_element_type=jnp.float32)


def _conv_kernel(p_ref, w_ref, sc_ref, sh_ref, o_ref,
                 *, apply_affine, apply_leaky):
    acc = _prologue_dot(p_ref, w_ref, sc_ref, sh_ref,
                        apply_affine=apply_affine, apply_leaky=apply_leaky)
    o_ref[...] = acc.astype(o_ref.dtype)


def _conv_stats_kernel(p_ref, w_ref, sc_ref, sh_ref, o_ref, s1_ref, s2_ref,
                       *, apply_affine, apply_leaky):
    acc = _prologue_dot(p_ref, w_ref, sc_ref, sh_ref,
                        apply_affine=apply_affine, apply_leaky=apply_leaky)
    o_ref[...] = acc.astype(o_ref.dtype)

    @pl.when(pl.program_id(0) == 0)
    def _():
        s1_ref[...] = jnp.zeros_like(s1_ref)
        s2_ref[...] = jnp.zeros_like(s2_ref)

    s1_ref[...] += jnp.sum(acc, axis=0, keepdims=True)
    s2_ref[...] += jnp.sum(acc * acc, axis=0, keepdims=True)


# --------------------------------------------------------------------------
# JAX glue
# --------------------------------------------------------------------------
def _pick_tile_m(M):
    """Largest M tile (multiple of 32) that divides M and gives grid > 1."""
    for tm in (512, 256, 128, 64, 32):
        if M > tm and M % tm == 0:
            return tm
    return M                       # full extent (always legal)


def _im2col_nhwc(x, k, stride, pad):
    """x: (N,H,W,C) -> patches (N*Ho*Wo, k*k*C), K ordered as (kh, kw, C)."""
    N, H, W, C = x.shape
    if pad:
        x = jnp.pad(x, ((0, 0), (pad, pad), (pad, pad), (0, 0)))
    Ho = (H + 2 * pad - k) // stride + 1
    Wo = (W + 2 * pad - k) // stride + 1
    taps = []
    for i in range(k):
        for j in range(k):
            taps.append(x[:, i:i + stride * Ho:stride,
                             j:j + stride * Wo:stride, :])      # (N,Ho,Wo,C)
    col = jnp.stack(taps, axis=3)                               # (N,Ho,Wo,k*k,C)
    return col.reshape(N * Ho * Wo, k * k * C), Ho, Wo


def conv_layer(act_nhwc, wmat, k, stride, pad, scale_c, shift_c,
               *, apply_affine, apply_leaky, with_stats, out_dtype):
    """One fused layer: [prologue] -> conv-as-matmul -> [BN stats epilogue].

    act_nhwc : (N,H,W,Cin) bf16 activation (or input image / pre-activated act)
    wmat     : (k*k*Cin, Cout) bf16, K ordered (kh, kw, Cin)
    scale_c/shift_c : (Cin,) f32 per-input-channel affine of the previous
        BatchNorm, fused in the kernel prologue only when apply_affine=True
        (which is only legal when pad == 0 -- PyTorch pads AFTER BN+LeakyReLU).
    """
    Nb, _, _, Cin = act_nhwc.shape
    patches, Ho, Wo = _im2col_nhwc(act_nhwc, k, stride, pad)
    M, K = patches.shape
    Cout = wmat.shape[1]

    if apply_affine:
        assert pad == 0, "fused affine prologue is only exact without padding"
        sc = jnp.tile(scale_c.astype(jnp.float32), k * k).reshape(1, K)
        sh = jnp.tile(shift_c.astype(jnp.float32), k * k).reshape(1, K)
    else:
        sc = jnp.ones((1, K), jnp.float32)
        sh = jnp.zeros((1, K), jnp.float32)

    tm = _pick_tile_m(M)
    grid = (M // tm,)

    in_specs = [
        pl.BlockSpec((tm, K), lambda i: (i, 0)),     # patches: tiled over M
        pl.BlockSpec((K, Cout), lambda i: (0, 0)),   # weights: resident
        pl.BlockSpec((1, K), lambda i: (0, 0)),      # scale row: resident
        pl.BlockSpec((1, K), lambda i: (0, 0)),      # shift row: resident
    ]

    if with_stats:
        kernel = functools.partial(_conv_stats_kernel,
                                   apply_affine=apply_affine,
                                   apply_leaky=apply_leaky)
        out_shape = (jax.ShapeDtypeStruct((M, Cout), out_dtype),
                     jax.ShapeDtypeStruct((1, Cout), jnp.float32),
                     jax.ShapeDtypeStruct((1, Cout), jnp.float32))
        out_specs = (pl.BlockSpec((tm, Cout), lambda i: (i, 0)),
                     pl.BlockSpec((1, Cout), lambda i: (0, 0)),
                     pl.BlockSpec((1, Cout), lambda i: (0, 0)))
        sem = ("arbitrary",)     # stats accumulate across the M grid
    else:
        kernel = functools.partial(_conv_kernel,
                                   apply_affine=apply_affine,
                                   apply_leaky=apply_leaky)
        out_shape = jax.ShapeDtypeStruct((M, Cout), out_dtype)
        out_specs = pl.BlockSpec((tm, Cout), lambda i: (i, 0))
        sem = ("parallel",)      # independent M tiles -> v7x dual-core shard

    res = pl.pallas_call(
        kernel,
        out_shape=out_shape,
        grid=grid,
        in_specs=in_specs,
        out_specs=out_specs,
        compiler_params=pltpu.CompilerParams(dimension_semantics=sem),
    )(patches, wmat, sc, sh)

    if with_stats:
        out2d, s1, s2 = res
        return out2d.reshape(Nb, Ho, Wo, Cout), s1[0], s2[0]
    return res.reshape(Nb, Ho, Wo, Cout)


def _bn_affine_from_stats(s1, s2, count, gamma, beta):
    """Fold batch mean/var (biased, PyTorch training mode) into scale/shift."""
    mean = s1 / count
    var = s2 / count - mean * mean
    scale = gamma * lax.rsqrt(var + BN_EPS)
    shift = beta - mean * scale
    return scale, shift


def _preact(h_bf16, scale_c, shift_c):
    """BN affine + LeakyReLU applied to the un-padded activation (f32 math),
    stored back to bf16.  Used for padded convs so the subsequent zero padding
    contributes exactly 0, matching PyTorch's conv(pad(leaky(bn(x))))."""
    a = (h_bf16.astype(jnp.float32) * scale_c.reshape(1, 1, 1, -1)
         + shift_c.reshape(1, 1, 1, -1))
    a = jnp.where(a >= 0.0, a, LEAKY_SLOPE * a)
    return a.astype(jnp.bfloat16)


def discriminator_forward_pallas(x_nchw, params):
    (w1, w2, g2, b2, w3, g3, b3, w4, g4, b4, w5) = params

    def wmat(w):   # OIHW -> (kh*kw*Cin, Cout) bf16, K ordered (kh, kw, Cin)
        O, I, kh, kw = w.shape
        return w.transpose(2, 3, 1, 0).reshape(kh * kw * I, O).astype(jnp.bfloat16)

    # Single NCHW -> NHWC conversion at the boundary; activations stay NHWC.
    x = x_nchw.transpose(0, 2, 3, 1).astype(jnp.bfloat16)

    # conv1: raw image, no prologue, no stats needed.
    h1 = conv_layer(x, wmat(w1), 4, 2, 1, None, None,
                    apply_affine=False, apply_leaky=False,
                    with_stats=False, out_dtype=jnp.bfloat16)

    # conv2: fused LeakyReLU prologue (leaky(0)=0 so zero padding stays exact);
    # accumulate BN2 stats on the conv2 output.
    h2, s1_2, s2_2 = conv_layer(h1, wmat(w2), 4, 2, 1, None, None,
                                apply_affine=False, apply_leaky=True,
                                with_stats=True, out_dtype=jnp.bfloat16)
    sc2, sh2 = _bn_affine_from_stats(s1_2, s2_2,
                                     h2.shape[0] * h2.shape[1] * h2.shape[2],
                                     g2, b2)

    # conv3: BN2 affine + LeakyReLU applied BEFORE padding (pad=1, shift != 0),
    # kernel does the plain bf16 matmul + BN3 stats.
    a2 = _preact(h2, sc2, sh2)
    h3, s1_3, s2_3 = conv_layer(a2, wmat(w3), 4, 2, 1, None, None,
                                apply_affine=False, apply_leaky=False,
                                with_stats=True, out_dtype=jnp.bfloat16)
    sc3, sh3 = _bn_affine_from_stats(s1_3, s2_3,
                                     h3.shape[0] * h3.shape[1] * h3.shape[2],
                                     g3, b3)

    # conv4: same pre-activation treatment (pad=1).
    a3 = _preact(h3, sc3, sh3)
    h4, s1_4, s2_4 = conv_layer(a3, wmat(w4), 4, 2, 1, None, None,
                                apply_affine=False, apply_leaky=False,
                                with_stats=True, out_dtype=jnp.bfloat16)
    sc4, sh4 = _bn_affine_from_stats(s1_4, s2_4,
                                     h4.shape[0] * h4.shape[1] * h4.shape[2],
                                     g4, b4)

    # conv5: padding=0 -> fused BN4 affine + LeakyReLU prologue is exact.
    h5 = conv_layer(h4, wmat(w5), 2, 1, 0, sc4, sh4,
                    apply_affine=True, apply_leaky=True,
                    with_stats=False, out_dtype=jnp.float32)

    # F.avg_pool2d(x, x.size()[2:]) == global average pool (1x1 spatial here);
    # channel dim is 1 so the NHWC result equals the NCHW (N,1,1,1) layout.
    return h5.mean(axis=(1, 2), keepdims=True)


# --------------------------------------------------------------------------
# Pure-JAX reference (lax.conv) mirroring the kernel numerics:
# bf16 conv inputs/weights + f32 accumulation, bf16 inter-layer storage,
# f32 BatchNorm (biased batch variance) and LeakyReLU.
# --------------------------------------------------------------------------
def discriminator_forward_ref(x_nchw, params):
    (w1, w2, g2, b2, w3, g3, b3, w4, g4, b4, w5) = params

    def conv(a, w, s, p):
        return lax.conv_general_dilated(
            a.astype(jnp.bfloat16), w.astype(jnp.bfloat16),
            (s, s), [(p, p), (p, p)],
            dimension_numbers=('NCHW', 'OIHW', 'NCHW'),
            preferred_element_type=jnp.float32)

    def leaky(h):
        return jnp.where(h >= 0.0, h, LEAKY_SLOPE * h)

    def bn_affine(h32, g, b):
        mean = h32.mean(axis=(0, 2, 3))
        var = (h32 * h32).mean(axis=(0, 2, 3)) - mean * mean   # biased
        scale = g * lax.rsqrt(var + BN_EPS)
        shift = b - mean * scale
        return scale.reshape(1, -1, 1, 1), shift.reshape(1, -1, 1, 1)

    def to_bf16_storage(h32):
        return h32.astype(jnp.bfloat16).astype(jnp.float32)

    h1 = conv(x_nchw, w1, 2, 1)
    a1 = to_bf16_storage(h1)
    h2 = conv(leaky(a1), w2, 2, 1)
    sc2, sh2 = bn_affine(h2, g2, b2)
    a2 = to_bf16_storage(h2)
    h3 = conv(leaky(a2 * sc2 + sh2), w3, 2, 1)
    sc3, sh3 = bn_affine(h3, g3, b3)
    a3 = to_bf16_storage(h3)
    h4 = conv(leaky(a3 * sc3 + sh3), w4, 2, 1)
    sc4, sh4 = bn_affine(h4, g4, b4)
    a4 = to_bf16_storage(h4)
    h5 = conv(leaky(a4 * sc4 + sh4), w5, 1, 0)
    return h5.mean(axis=(2, 3), keepdims=True)


# --------------------------------------------------------------------------
def make_params(key, d):
    ks = jax.random.split(key, 5)
    w1 = 0.02 * jax.random.normal(ks[0], (d, 3, 4, 4), jnp.float32)
    w2 = 0.02 * jax.random.normal(ks[1], (2 * d, d, 4, 4), jnp.float32)
    w3 = 0.02 * jax.random.normal(ks[2], (4 * d, 2 * d, 4, 4), jnp.float32)
    w4 = 0.02 * jax.random.normal(ks[3], (8 * d, 4 * d, 4, 4), jnp.float32)
    w5 = 0.02 * jax.random.normal(ks[4], (1, 8 * d, 2, 2), jnp.float32)
    g2, b2 = jnp.ones((2 * d,), jnp.float32), jnp.zeros((2 * d,), jnp.float32)
    g3, b3 = jnp.ones((4 * d,), jnp.float32), jnp.zeros((4 * d,), jnp.float32)
    g4, b4 = jnp.ones((8 * d,), jnp.float32), jnp.zeros((8 * d,), jnp.float32)
    return (w1, w2, g2, b2, w3, g3, b3, w4, g4, b4, w5)


if __name__ == "__main__":
    key = jax.random.PRNGKey(0)
    kx, kp = jax.random.split(key)
    x = jax.random.normal(kx, (2, 3, 32, 32), jnp.float32)   # NCHW, like PyTorch
    params = make_params(kp, dimension)

    fwd = jax.jit(discriminator_forward_pallas)
    out = jax.block_until_ready(fwd(x, params))
    ref = jax.block_until_ready(discriminator_forward_ref(x, params))

    assert out.shape == (2, 1, 1, 1), out.shape
    np.testing.assert_allclose(np.asarray(out), np.asarray(ref),
                               rtol=2e-3, atol=2e-3)
    print("KERNEL_OK")
</pallas_src>

<mosaic_0001>
module attributes {stable_mosaic.version = 11 : i64} {
  func.func @_conv_kernel(%arg0: i32, %arg1: memref<256x48xbf16, #tpu.memory_space<vmem>>, %arg2: memref<48x8xbf16, #tpu.memory_space<vmem>>, %arg3: memref<1x48xf32, #tpu.memory_space<vmem>>, %arg4: memref<1x48xf32, #tpu.memory_space<vmem>>, %arg5: memref<256x8xbf16, #tpu.memory_space<vmem>>) attributes {dimension_semantics = [#tpu.dimension_semantics<parallel>], iteration_bounds = array<i64: 2>, scalar_prefetch = 0 : i64, scratch_operands = 0 : i64, tpu.core_type = #tpu.core_type<tc>, window_params = [{transform_indices = @transform_0, window_bounds = array<i64: 256, 48>}, {pipeline_mode = #tpu.pipeline_mode<synchronous>, transform_indices = @transform_1, window_bounds = array<i64: 48, 8>}, {pipeline_mode = #tpu.pipeline_mode<synchronous>, transform_indices = @transform_2, window_bounds = array<i64: 1, 48>}, {pipeline_mode = #tpu.pipeline_mode<synchronous>, transform_indices = @transform_3, window_bounds = array<i64: 1, 48>}, {transform_indices = @transform_4, window_bounds = array<i64: 256, 8>}]} {
    %c0 = arith.constant 0 : index
    %c0_0 = arith.constant 0 : index
    %0 = vector.load %arg1[%c0, %c0_0] : memref<256x48xbf16, #tpu.memory_space<vmem>>, vector<256x48xbf16>
    %c0_1 = arith.constant 0 : index
    %c0_2 = arith.constant 0 : index
    %1 = vector.load %arg2[%c0_1, %c0_2] : memref<48x8xbf16, #tpu.memory_space<vmem>>, vector<48x8xbf16>
    %cst = arith.constant dense<0.000000e+00> : vector<256x8xf32>
    %2 = tpu.matmul %0, %1, %cst {dimension_numbers = #tpu.dot_dimension_numbers<[1], [0], [0], [1], [0, 0, 1, 1], [], []>} : vector<256x48xbf16>, vector<48x8xbf16>, vector<256x8xf32> -> vector<256x8xf32>
    %3 = arith.truncf %2 : vector<256x8xf32> to vector<256x8xbf16>
    %c0_3 = arith.constant 0 : index
    %c0_4 = arith.constant 0 : index
    %4 = vector.load %arg5[%c0_3, %c0_4] : memref<256x8xbf16, #tpu.memory_space<vmem>>, vector<256x8xbf16>
    tpu.vector_store %arg5[%c0_3, %c0_4], %3 {strides = array<i32>} : memref<256x8xbf16, #tpu.memory_space<vmem>>, vector<256x8xbf16>,
    return
  }
  func.func @transform_0(%arg0: i32) -> (i32, i32) {
    %c0_i32 = arith.constant 0 : i32
    %c0_i32_0 = arith.constant 0 : i32
    return %arg0, %c0_i32 : i32, i32
  }
  func.func @transform_1(%arg0: i32) -> (i32, i32) {
    %c0_i32 = arith.constant 0 : i32
    %c0_i32_0 = arith.constant 0 : i32
    %c0_i32_1 = arith.constant 0 : i32
    return %c0_i32, %c0_i32_0 : i32, i32
  }
  func.func @transform_2(%arg0: i32) -> (i32, i32) {
    %c0_i32 = arith.constant 0 : i32
    %c0_i32_0 = arith.constant 0 : i32
    %c0_i32_1 = arith.constant 0 : i32
    return %c0_i32, %c0_i32_0 : i32, i32
  }
  func.func @transform_3(%arg0: i32) -> (i32, i32) {
    %c0_i32 = arith.constant 0 : i32
    %c0_i32_0 = arith.constant 0 : i32
    %c0_i32_1 = arith.constant 0 : i32
    return %c0_i32, %c0_i32_0 : i32, i32
  }
  func.func @transform_4(%arg0: i32) -> (i32, i32) {
    %c0_i32 = arith.constant 0 : i32
    %c0_i32_0 = arith.constant 0 : i32
    return %arg0, %c0_i32 : i32, i32
  }
}

module attributes {stable_mosaic.version = 11 : i64} {
  func.func @_conv_stats_kernel(%arg0: i32, %arg1: memref<64x128xbf16, #tpu.memory_space<vmem>>, %arg2: memref<128x16xbf16, #tpu.memory_space<vmem>>, %arg3: memref<1x128xf32, #tpu.memory_space<vmem>>, %arg4: memref<1x128xf32, #tpu.memory_space<vmem>>, %arg5: memref<64x16xbf16, #tpu.memory_space<vmem>>, %arg6: memref<1x16xf32, #tpu.memory_space<vmem>>, %arg7: memref<1x16xf32, #tpu.memory_space<vmem>>) attributes {dimension_semantics = [#tpu.dimension_semantics<arbitrary>], iteration_bounds = array<i64: 2>, scalar_prefetch = 0 : i64, scratch_operands = 0 : i64, tpu.core_type = #tpu.core_type<tc>, window_params = [{transform_indices = @transform_0, window_bounds = array<i64: 64, 128>}, {pipeline_mode = #tpu.pipeline_mode<synchronous>, transform_indices = @transform_1, window_bounds = array<i64: 128, 16>}, {pipeline_mode = #tpu.pipeline_mode<synchronous>, transform_indices = @transform_2, window_bounds = array<i64: 1, 128>}, {pipeline_mode = #tpu.pipeline_mode<synchronous>, transform_indices = @transform_3, window_bounds = array<i64: 1, 128>}, {transform_indices = @transform_4, window_bounds = array<i64: 64, 16>}, {pipeline_mode = #tpu.pipeline_mode<synchronous>, transform_indices = @transform_5, window_bounds = array<i64: 1, 16>}, {pipeline_mode = #tpu.pipeline_mode<synchronous>, transform_indices = @transform_6, window_bounds = array<i64: 1, 16>}]} {
    %c0 = arith.constant 0 : index
    %c0_0 = arith.constant 0 : index
    %0 = vector.load %arg1[%c0, %c0_0] : memref<64x128xbf16, #tpu.memory_space<vmem>>, vector<64x128xbf16>
    %1 = arith.extf %0 : vector<64x128xbf16> to vector<64x128xf32>
    %cst = arith.constant 0.000000e+00 : f32
    %2 = vector.broadcast %cst : f32 to vector<64x128xf32>
    %3 = arith.cmpf oge, %1, %2 : vector<64x128xf32>
    %cst_1 = arith.constant 2.000000e-01 : f32
    %4 = vector.broadcast %cst_1 : f32 to vector<64x128xf32>
    %5 = arith.mulf %4, %1 : vector<64x128xf32>
    %6 = arith.select %3, %1, %5 : vector<64x128xi1>, vector<64x128xf32>
    %7 = arith.truncf %6 : vector<64x128xf32> to vector<64x128xbf16>
    %c0_2 = arith.constant 0 : index
    %c0_3 = arith.constant 0 : index
    %8 = vector.load %arg2[%c0_2, %c0_3] : memref<128x16xbf16, #tpu.memory_space<vmem>>, vector<128x16xbf16>
    %cst_4 = arith.constant dense<0.000000e+00> : vector<64x16xf32>
    %9 = tpu.matmul %7, %8, %cst_4 {dimension_numbers = #tpu.dot_dimension_numbers<[1], [0], [0], [1], [0, 0, 1, 1], [], []>} : vector<64x128xbf16>, vector<128x16xbf16>, vector<64x16xf32> -> vector<64x16xf32>
    %10 = arith.truncf %9 : vector<64x16xf32> to vector<64x16xbf16>
    %c0_5 = arith.constant 0 : index
    %c0_6 = arith.constant 0 : index
    %11 = vector.load %arg5[%c0_5, %c0_6] : memref<64x16xbf16, #tpu.memory_space<vmem>>, vector<64x16xbf16>
    tpu.vector_store %arg5[%c0_5, %c0_6], %10 {strides = array<i32>} : memref<64x16xbf16, #tpu.memory_space<vmem>>, vector<64x16xbf16>,
    %c0_i32 = arith.constant 0 : i32
    %12 = arith.cmpi eq, %arg0, %c0_i32 : i32
    %13 = arith.extui %12 : i1 to i32
    %c0_i32_7 = arith.constant 0 : i32
    %14 = arith.cmpi ne, %13, %c0_i32_7 : i32
    scf.if %14 {
      %cst_18 = arith.constant 0.000000e+00 : f32
      %26 = vector.broadcast %cst_18 : f32 to vector<1x16xf32>
      %c0_19 = arith.constant 0 : index
      %c0_20 = arith.constant 0 : index
      %27 = vector.load %arg6[%c0_19, %c0_20] : memref<1x16xf32, #tpu.memory_space<vmem>>, vector<1x16xf32>
      tpu.vector_store %arg6[%c0_19, %c0_20], %26 {strides = array<i32>} : memref<1x16xf32, #tpu.memory_space<vmem>>, vector<1x16xf32>,
      %cst_21 = arith.constant 0.000000e+00 : f32
      %28 = vector.broadcast %cst_21 : f32 to vector<1x16xf32>
      %c0_22 = arith.constant 0 : index
      %c0_23 = arith.constant 0 : index
      %29 = vector.load %arg7[%c0_22, %c0_23] : memref<1x16xf32, #tpu.memory_space<vmem>>, vector<1x16xf32>
      tpu.vector_store %arg7[%c0_22, %c0_23], %28 {strides = array<i32>} : memref<1x16xf32, #tpu.memory_space<vmem>>, vector<1x16xf32>,
    } else {
    }
    %c0_8 = arith.constant 0 : index
    %c0_9 = arith.constant 0 : index
    %15 = vector.load %arg6[%c0_8, %c0_9] : memref<1x16xf32, #tpu.memory_space<vmem>>, vector<1x16xf32>
    %cst_10 = arith.constant dense<0.000000e+00> : vector<16xf32>
    %16 = vector.multi_reduction <add>, %9, %cst_10 [0] : vector<64x16xf32> to vector<16xf32>
    %17 = vector.shape_cast %16 : vector<16xf32> to vector<1x16xf32>
    %18 = arith.addf %15, %17 : vector<1x16xf32>
    %c0_11 = arith.constant 0 : index
    %c0_12 = arith.constant 0 : index
    %19 = vector.load %arg6[%c0_11, %c0_12] : memref<1x16xf32, #tpu.memory_space<vmem>>, vector<1x16xf32>
    tpu.vector_store %arg6[%c0_11, %c0_12], %18 {strides = array<i32>} : memref<1x16xf32, #tpu.memory_space<vmem>>, vector<1x16xf32>,
    %c0_13 = arith.constant 0 : index
    %c0_14 = arith.constant 0 : index
    %20 = vector.load %arg7[%c0_13, %c0_14] : memref<1x16xf32, #tpu.memory_space<vmem>>, vector<1x16xf32>
    %21 = arith.mulf %9, %9 : vector<64x16xf32>
    %cst_15 = arith.constant dense<0.000000e+00> : vector<16xf32>
    %22 = vector.multi_reduction <add>, %21, %cst_15 [0] : vector<64x16xf32> to vector<16xf32>
    %23 = vector.shape_cast %22 : vector<16xf32> to vector<1x16xf32>
    %24 = arith.addf %20, %23 : vector<1x16xf32>
    %c0_16 = arith.constant 0 : index
    %c0_17 = arith.constant 0 : index
    %25 = vector.load %arg7[%c0_16, %c0_17] : memref<1x16xf32, #tpu.memory_space<vmem>>, vector<1x16xf32>
    tpu.vector_store %arg7[%c0_16, %c0_17], %24 {strides = array<i32>} : memref<1x16xf32, #tpu.memory_space<vmem>>, vector<1x16xf32>,
    return
  }
  func.func @transform_0(%arg0: i32) -> (i32, i32) {
    %c0_i32 = arith.constant 0 : i32
    %c0_i32_0 = arith.constant 0 : i32
    return %arg0, %c0_i32 : i32, i32
  }
  func.func @transform_1(%arg0: i32) -> (i32, i32) {
    %c0_i32 = arith.constant 0 : i32
    %c0_i32_0 = arith.constant 0 : i32
    %c0_i32_1 = arith.constant 0 : i32
    return %c0_i32, %c0_i32_0 : i32, i32
  }
  func.func @transform_2(%arg0: i32) -> (i32, i32) {
    %c0_i32 = arith.constant 0 : i32
    %c0_i32_0 = arith.constant 0 : i32
    %c0_i32_1 = arith.constant 0 : i32
    return %c0_i32, %c0_i32_0 : i32, i32
  }
  func.func @transform_3(%arg0: i32) -> (i32, i32) {
    %c0_i32 = arith.constant 0 : i32
    %c0_i32_0 = arith.constant 0 : i32
    %c0_i32_1 = arith.constant 0 : i32
    return %c0_i32, %c0_i32_0 : i32, i32
  }
  func.func @transform_4(%arg0: i32) -> (i32, i32) {
    %c0_i32 = arith.constant 0 : i32
    %c0_i32_0 = arith.constant 0 : i32
    return %arg0, %c0_i32 : i32, i32
  }
  func.func @transform_5(%arg0: i32) -> (i32, i32) {
    %c0_i32 = arith.constant 0 : i32
    %c0_i32_0 = arith.constant 0 : i32
    %c0_i32_1 = arith.constant 0 : i32
    return %c0_i32, %c0_i32_0 : i32, i32
  }
  func.func @transform_6(%arg0: i32) -> (i32, i32) {
    %c0_i32 = arith.constant 0 : i32
    %c0_i32_0 = arith.constant 0 : i32
    %c0_i32_1 = arith.constant 0 : i32
    return %c0_i32, %c0_i32_0 : i32, i32
  }
}

module attributes {stable_mosaic.version = 11 : i64} {
  func.func @_conv_stats_kernel(%arg0: i32, %arg1: memref<32x256xbf16, #tpu.memory_space<vmem>>, %arg2: memref<256x32xbf16, #tpu.memory_space<vmem>>, %arg3: memref<1x256xf32, #tpu.memory_space<vmem>>, %arg4: memref<1x256xf32, #tpu.memory_space<vmem>>, %arg5: memref<32x32xbf16, #tpu.memory_space<vmem>>, %arg6: memref<1x32xf32, #tpu.memory_space<vmem>>, %arg7: memref<1x32xf32, #tpu.memory_space<vmem>>) attributes {dimension_semantics = [#tpu.dimension_semantics<arbitrary>], iteration_bounds = array<i64: 1>, scalar_prefetch = 0 : i64, scratch_operands = 0 : i64, tpu.core_type = #tpu.core_type<tc>, window_params = [{transform_indices = @transform_0, window_bounds = array<i64: 32, 256>}, {pipeline_mode = #tpu.pipeline_mode<synchronous>, transform_indices = @transform_1, window_bounds = array<i64: 256, 32>}, {pipeline_mode = #tpu.pipeline_mode<synchronous>, transform_indices = @transform_2, window_bounds = array<i64: 1, 256>}, {pipeline_mode = #tpu.pipeline_mode<synchronous>, transform_indices = @transform_3, window_bounds = array<i64: 1, 256>}, {transform_indices = @transform_4, window_bounds = array<i64: 32, 32>}, {pipeline_mode = #tpu.pipeline_mode<synchronous>, transform_indices = @transform_5, window_bounds = array<i64: 1, 32>}, {pipeline_mode = #tpu.pipeline_mode<synchronous>, transform_indices = @transform_6, window_bounds = array<i64: 1, 32>}]} {
    %c0 = arith.constant 0 : index
    %c0_0 = arith.constant 0 : index
    %0 = vector.load %arg1[%c0, %c0_0] : memref<32x256xbf16, #tpu.memory_space<vmem>>, vector<32x256xbf16>
    %c0_1 = arith.constant 0 : index
    %c0_2 = arith.constant 0 : index
    %1 = vector.load %arg2[%c0_1, %c0_2] : memref<256x32xbf16, #tpu.memory_space<vmem>>, vector<256x32xbf16>
    %cst = arith.constant dense<0.000000e+00> : vector<32x32xf32>
    %2 = tpu.matmul %0, %1, %cst {dimension_numbers = #tpu.dot_dimension_numbers<[1], [0], [0], [1], [0, 0, 1, 1], [], []>} : vector<32x256xbf16>, vector<256x32xbf16>, vector<32x32xf32> -> vector<32x32xf32>
    %3 = arith.truncf %2 : vector<32x32xf32> to vector<32x32xbf16>
    %c0_3 = arith.constant 0 : index
    %c0_4 = arith.constant 0 : index
    %4 = vector.load %arg5[%c0_3, %c0_4] : memref<32x32xbf16, #tpu.memory_space<vmem>>, vector<32x32xbf16>
    tpu.vector_store %arg5[%c0_3, %c0_4], %3 {strides = array<i32>} : memref<32x32xbf16, #tpu.memory_space<vmem>>, vector<32x32xbf16>,
    %c0_i32 = arith.constant 0 : i32
    %5 = arith.cmpi eq, %arg0, %c0_i32 : i32
    %6 = arith.extui %5 : i1 to i32
    %c0_i32_5 = arith.constant 0 : i32
    %7 = arith.cmpi ne, %6, %c0_i32_5 : i32
    scf.if %7 {
      %cst_16 = arith.constant 0.000000e+00 : f32
      %19 = vector.broadcast %cst_16 : f32 to vector<1x32xf32>
      %c0_17 = arith.constant 0 : index
      %c0_18 = arith.constant 0 : index
      %20 = vector.load %arg6[%c0_17, %c0_18] : memref<1x32xf32, #tpu.memory_space<vmem>>, vector<1x32xf32>
      tpu.vector_store %arg6[%c0_17, %c0_18], %19 {strides = array<i32>} : memref<1x32xf32, #tpu.memory_space<vmem>>, vector<1x32xf32>,
      %cst_19 = arith.constant 0.000000e+00 : f32
      %21 = vector.broadcast %cst_19 : f32 to vector<1x32xf32>
      %c0_20 = arith.constant 0 : index
      %c0_21 = arith.constant 0 : index
      %22 = vector.load %arg7[%c0_20, %c0_21] : memref<1x32xf32, #tpu.memory_space<vmem>>, vector<1x32xf32>
      tpu.vector_store %arg7[%c0_20, %c0_21], %21 {strides = array<i32>} : memref<1x32xf32, #tpu.memory_space<vmem>>, vector<1x32xf32>,
    } else {
    }
    %c0_6 = arith.constant 0 : index
    %c0_7 = arith.constant 0 : index
    %8 = vector.load %arg6[%c0_6, %c0_7] : memref<1x32xf32, #tpu.memory_space<vmem>>, vector<1x32xf32>
    %cst_8 = arith.constant dense<0.000000e+00> : vector<32xf32>
    %9 = vector.multi_reduction <add>, %2, %cst_8 [0] : vector<32x32xf32> to vector<32xf32>
    %10 = vector.shape_cast %9 : vector<32xf32> to vector<1x32xf32>
    %11 = arith.addf %8, %10 : vector<1x32xf32>
    %c0_9 = arith.constant 0 : index
    %c0_10 = arith.constant 0 : index
    %12 = vector.load %arg6[%c0_9, %c0_10] : memref<1x32xf32, #tpu.memory_space<vmem>>, vector<1x32xf32>
    tpu.vector_store %arg6[%c0_9, %c0_10], %11 {strides = array<i32>} : memref<1x32xf32, #tpu.memory_space<vmem>>, vector<1x32xf32>,
    %c0_11 = arith.constant 0 : index
    %c0_12 = arith.constant 0 : index
    %13 = vector.load %arg7[%c0_11, %c0_12] : memref<1x32xf32, #tpu.memory_space<vmem>>, vector<1x32xf32>
    %14 = arith.mulf %2, %2 : vector<32x32xf32>
    %cst_13 = arith.constant dense<0.000000e+00> : vector<32xf32>
    %15 = vector.multi_reduction <add>, %14, %cst_13 [0] : vector<32x32xf32> to vector<32xf32>
    %16 = vector.shape_cast %15 : vector<32xf32> to vector<1x32xf32>
    %17 = arith.addf %13, %16 : vector<1x32xf32>
    %c0_14 = arith.constant 0 : index
    %c0_15 = arith.constant 0 : index
    %18 = vector.load %arg7[%c0_14, %c0_15] : memref<1x32xf32, #tpu.memory_space<vmem>>, vector<1x32xf32>
    tpu.vector_store %arg7[%c0_14, %c0_15], %17 {strides = array<i32>} : memref<1x32xf32, #tpu.memory_space<vmem>>, vector<1x32xf32>,
    return
  }
  func.func @transform_0(%arg0: i32) -> (i32, i32) {
    %c0_i32 = arith.constant 0 : i32
    %c0_i32_0 = arith.constant 0 : i32
    return %arg0, %c0_i32 : i32, i32
  }
  func.func @transform_1(%arg0: i32) -> (i32, i32) {
    %c0_i32 = arith.constant 0 : i32
    %c0_i32_0 = arith.constant 0 : i32
    %c0_i32_1 = arith.constant 0 : i32
    return %c0_i32, %c0_i32_0 : i32, i32
  }
  func.func @transform_2(%arg0: i32) -> (i32, i32) {
    %c0_i32 = arith.constant 0 : i32
    %c0_i32_0 = arith.constant 0 : i32
    %c0_i32_1 = arith.constant 0 : i32
    return %c0_i32, %c0_i32_0 : i32, i32
  }
  func.func @transform_3(%arg0: i32) -> (i32, i32) {
    %c0_i32 = arith.constant 0 : i32
    %c0_i32_0 = arith.constant 0 : i32
    %c0_i32_1 = arith.constant 0 : i32
    return %c0_i32, %c0_i32_0 : i32, i32
  }
  func.func @transform_4(%arg0: i32) -> (i32, i32) {
    %c0_i32 = arith.constant 0 : i32
    %c0_i32_0 = arith.constant 0 : i32
    return %arg0, %c0_i32 : i32, i32
  }
  func.func @transform_5(%arg0: i32) -> (i32, i32) {
    %c0_i32 = arith.constant 0 : i32
    %c0_i32_0 = arith.constant 0 : i32
    %c0_i32_1 = arith.constant 0 : i32
    return %c0_i32, %c0_i32_0 : i32, i32
  }
  func.func @transform_6(%arg0: i32) -> (i32, i32) {
    %c0_i32 = arith.constant 0 : i32
    %c0_i32_0 = arith.constant 0 : i32
    %c0_i32_1 = arith.constant 0 : i32
    return %c0_i32, %c0_i32_0 : i32, i32
  }
}

module attributes {stable_mosaic.version = 11 : i64} {
  func.func @_conv_stats_kernel(%arg0: i32, %arg1: memref<8x512xbf16, #tpu.memory_space<vmem>>, %arg2: memref<512x64xbf16, #tpu.memory_space<vmem>>, %arg3: memref<1x512xf32, #tpu.memory_space<vmem>>, %arg4: memref<1x512xf32, #tpu.memory_space<vmem>>, %arg5: memref<8x64xbf16, #tpu.memory_space<vmem>>, %arg6: memref<1x64xf32, #tpu.memory_space<vmem>>, %arg7: memref<1x64xf32, #tpu.memory_space<vmem>>) attributes {dimension_semantics = [#tpu.dimension_semantics<arbitrary>], iteration_bounds = array<i64: 1>, scalar_prefetch = 0 : i64, scratch_operands = 0 : i64, tpu.core_type = #tpu.core_type<tc>, window_params = [{transform_indices = @transform_0, window_bounds = array<i64: 8, 512>}, {pipeline_mode = #tpu.pipeline_mode<synchronous>, transform_indices = @transform_1, window_bounds = array<i64: 512, 64>}, {pipeline_mode = #tpu.pipeline_mode<synchronous>, transform_indices = @transform_2, window_bounds = array<i64: 1, 512>}, {pipeline_mode = #tpu.pipeline_mode<synchronous>, transform_indices = @transform_3, window_bounds = array<i64: 1, 512>}, {transform_indices = @transform_4, window_bounds = array<i64: 8, 64>}, {pipeline_mode = #tpu.pipeline_mode<synchronous>, transform_indices = @transform_5, window_bounds = array<i64: 1, 64>}, {pipeline_mode = #tpu.pipeline_mode<synchronous>, transform_indices = @transform_6, window_bounds = array<i64: 1, 64>}]} {
    %c0 = arith.constant 0 : index
    %c0_0 = arith.constant 0 : index
    %0 = vector.load %arg1[%c0, %c0_0] : memref<8x512xbf16, #tpu.memory_space<vmem>>, vector<8x512xbf16>
    %c0_1 = arith.constant 0 : index
    %c0_2 = arith.constant 0 : index
    %1 = vector.load %arg2[%c0_1, %c0_2] : memref<512x64xbf16, #tpu.memory_space<vmem>>, vector<512x64xbf16>
    %cst = arith.constant dense<0.000000e+00> : vector<8x64xf32>
    %2 = tpu.matmul %0, %1, %cst {dimension_numbers = #tpu.dot_dimension_numbers<[1], [0], [0], [1], [0, 0, 1, 1], [], []>} : vector<8x512xbf16>, vector<512x64xbf16>, vector<8x64xf32> -> vector<8x64xf32>
    %3 = arith.truncf %2 : vector<8x64xf32> to vector<8x64xbf16>
    %c0_3 = arith.constant 0 : index
    %c0_4 = arith.constant 0 : index
    %4 = vector.load %arg5[%c0_3, %c0_4] : memref<8x64xbf16, #tpu.memory_space<vmem>>, vector<8x64xbf16>
    tpu.vector_store %arg5[%c0_3, %c0_4], %3 {strides = array<i32>} : memref<8x64xbf16, #tpu.memory_space<vmem>>, vector<8x64xbf16>,
    %c0_i32 = arith.constant 0 : i32
    %5 = arith.cmpi eq, %arg0, %c0_i32 : i32
    %6 = arith.extui %5 : i1 to i32
    %c0_i32_5 = arith.constant 0 : i32
    %7 = arith.cmpi ne, %6, %c0_i32_5 : i32
    scf.if %7 {
      %cst_16 = arith.constant 0.000000e+00 : f32
      %19 = vector.broadcast %cst_16 : f32 to vector<1x64xf32>
      %c0_17 = arith.constant 0 : index
      %c0_18 = arith.constant 0 : index
      %20 = vector.load %arg6[%c0_17, %c0_18] : memref<1x64xf32, #tpu.memory_space<vmem>>, vector<1x64xf32>
      tpu.vector_store %arg6[%c0_17, %c0_18], %19 {strides = array<i32>} : memref<1x64xf32, #tpu.memory_space<vmem>>, vector<1x64xf32>,
      %cst_19 = arith.constant 0.000000e+00 : f32
      %21 = vector.broadcast %cst_19 : f32 to vector<1x64xf32>
      %c0_20 = arith.constant 0 : index
      %c0_21 = arith.constant 0 : index
      %22 = vector.load %arg7[%c0_20, %c0_21] : memref<1x64xf32, #tpu.memory_space<vmem>>, vector<1x64xf32>
      tpu.vector_store %arg7[%c0_20, %c0_21], %21 {strides = array<i32>} : memref<1x64xf32, #tpu.memory_space<vmem>>, vector<1x64xf32>,
    } else {
    }
    %c0_6 = arith.constant 0 : index
    %c0_7 = arith.constant 0 : index
    %8 = vector.load %arg6[%c0_6, %c0_7] : memref<1x64xf32, #tpu.memory_space<vmem>>, vector<1x64xf32>
    %cst_8 = arith.constant dense<0.000000e+00> : vector<64xf32>
    %9 = vector.multi_reduction <add>, %2, %cst_8 [0] : vector<8x64xf32> to vector<64xf32>
    %10 = vector.shape_cast %9 : vector<64xf32> to vector<1x64xf32>
    %11 = arith.addf %8, %10 : vector<1x64xf32>
    %c0_9 = arith.constant 0 : index
    %c0_10 = arith.constant 0 : index
    %12 = vector.load %arg6[%c0_9, %c0_10] : memref<1x64xf32, #tpu.memory_space<vmem>>, vector<1x64xf32>
    tpu.vector_store %arg6[%c0_9, %c0_10], %11 {strides = array<i32>} : memref<1x64xf32, #tpu.memory_space<vmem>>, vector<1x64xf32>,
    %c0_11 = arith.constant 0 : index
    %c0_12 = arith.constant 0 : index
    %13 = vector.load %arg7[%c0_11, %c0_12] : memref<1x64xf32, #tpu.memory_space<vmem>>, vector<1x64xf32>
    %14 = arith.mulf %2, %2 : vector<8x64xf32>
    %cst_13 = arith.constant dense<0.000000e+00> : vector<64xf32>
    %15 = vector.multi_reduction <add>, %14, %cst_13 [0] : vector<8x64xf32> to vector<64xf32>
    %16 = vector.shape_cast %15 : vector<64xf32> to vector<1x64xf32>
    %17 = arith.addf %13, %16 : vector<1x64xf32>
    %c0_14 = arith.constant 0 : index
    %c0_15 = arith.constant 0 : index
    %18 = vector.load %arg7[%c0_14, %c0_15] : memref<1x64xf32, #tpu.memory_space<vmem>>, vector<1x64xf32>
    tpu.vector_store %arg7[%c0_14, %c0_15], %17 {strides = array<i32>} : memref<1x64xf32, #tpu.memory_space<vmem>>, vector<1x64xf32>,
    return
  }
  func.func @transform_0(%arg0: i32) -> (i32, i32) {
    %c0_i32 = arith.constant 0 : i32
    %c0_i32_0 = arith.constant 0 : i32
    return %arg0, %c0_i32 : i32, i32
  }
  func.func @transform_1(%arg0: i32) -> (i32, i32) {
    %c0_i32 = arith.constant 0 : i32
    %c0_i32_0 = arith.constant 0 : i32
    %c0_i32_1 = arith.constant 0 : i32
    return %c0_i32, %c0_i32_0 : i32, i32
  }
  func.func @transform_2(%arg0: i32) -> (i32, i32) {
    %c0_i32 = arith.constant 0 : i32
    %c0_i32_0 = arith.constant 0 : i32
    %c0_i32_1 = arith.constant 0 : i32
    return %c0_i32, %c0_i32_0 : i32, i32
  }
  func.func @transform_3(%arg0: i32) -> (i32, i32) {
    %c0_i32 = arith.constant 0 : i32
    %c0_i32_0 = arith.constant 0 : i32
    %c0_i32_1 = arith.constant 0 : i32
    return %c0_i32, %c0_i32_0 : i32, i32
  }
  func.func @transform_4(%arg0: i32) -> (i32, i32) {
    %c0_i32 = arith.constant 0 : i32
    %c0_i32_0 = arith.constant 0 : i32
    return %arg0, %c0_i32 : i32, i32
  }
  func.func @transform_5(%arg0: i32) -> (i32, i32) {
    %c0_i32 = arith.constant 0 : i32
    %c0_i32_0 = arith.constant 0 : i32
    %c0_i32_1 = arith.constant 0 : i32
    return %c0_i32, %c0_i32_0 : i32, i32
  }
  func.func @transform_6(%arg0: i32) -> (i32, i32) {
    %c0_i32 = arith.constant 0 : i32
    %c0_i32_0 = arith.constant 0 : i32
    %c0_i32_1 = arith.constant 0 : i32
    return %c0_i32, %c0_i32_0 : i32, i32
  }
}

module attributes {stable_mosaic.version = 11 : i64} {
  func.func @_conv_kernel(%arg0: i32, %arg1: memref<2x256xbf16, #tpu.memory_space<vmem>>, %arg2: memref<256x1xbf16, #tpu.memory_space<vmem>>, %arg3: memref<1x256xf32, #tpu.memory_space<vmem>>, %arg4: memref<1x256xf32, #tpu.memory_space<vmem>>, %arg5: memref<2x1xf32, #tpu.memory_space<vmem>>) attributes {dimension_semantics = [#tpu.dimension_semantics<parallel>], iteration_bounds = array<i64: 1>, scalar_prefetch = 0 : i64, scratch_operands = 0 : i64, tpu.core_type = #tpu.core_type<tc>, window_params = [{transform_indices = @transform_0, window_bounds = array<i64: 2, 256>}, {pipeline_mode = #tpu.pipeline_mode<synchronous>, transform_indices = @transform_1, window_bounds = array<i64: 256, 1>}, {pipeline_mode = #tpu.pipeline_mode<synchronous>, transform_indices = @transform_2, window_bounds = array<i64: 1, 256>}, {pipeline_mode = #tpu.pipeline_mode<synchronous>, transform_indices = @transform_3, window_bounds = array<i64: 1, 256>}, {transform_indices = @transform_4, window_bounds = array<i64: 2, 1>}]} {
    %c0 = arith.constant 0 : index
    %c0_0 = arith.constant 0 : index
    %0 = vector.load %arg1[%c0, %c0_0] : memref<2x256xbf16, #tpu.memory_space<vmem>>, vector<2x256xbf16>
    %1 = arith.extf %0 : vector<2x256xbf16> to vector<2x256xf32>
    %c0_1 = arith.constant 0 : index
    %c0_2 = arith.constant 0 : index
    %2 = vector.load %arg3[%c0_1, %c0_2] : memref<1x256xf32, #tpu.memory_space<vmem>>, vector<1x256xf32>
    %3 = vector.broadcast %2 : vector<1x256xf32> to vector<2x256xf32>
    %4 = arith.mulf %1, %3 : vector<2x256xf32>
    %c0_3 = arith.constant 0 : index
    %c0_4 = arith.constant 0 : index
    %5 = vector.load %arg4[%c0_3, %c0_4] : memref<1x256xf32, #tpu.memory_space<vmem>>, vector<1x256xf32>
    %6 = vector.broadcast %5 : vector<1x256xf32> to vector<2x256xf32>
    %7 = arith.addf %4, %6 : vector<2x256xf32>
    %cst = arith.constant 0.000000e+00 : f32
    %8 = vector.broadcast %cst : f32 to vector<2x256xf32>
    %9 = arith.cmpf oge, %7, %8 : vector<2x256xf32>
    %cst_5 = arith.constant 2.000000e-01 : f32
    %10 = vector.broadcast %cst_5 : f32 to vector<2x256xf32>
    %11 = arith.mulf %10, %7 : vector<2x256xf32>
    %12 = arith.select %9, %7, %11 : vector<2x256xi1>, vector<2x256xf32>
    %13 = arith.truncf %12 : vector<2x256xf32> to vector<2x256xbf16>
    %c0_6 = arith.constant 0 : index
    %c0_7 = arith.constant 0 : index
    %14 = vector.load %arg2[%c0_6, %c0_7] : memref<256x1xbf16, #tpu.memory_space<vmem>>, vector<256x1xbf16>
    %cst_8 = arith.constant dense<0.000000e+00> : vector<2x1xf32>
    %15 = tpu.matmul %13, %14, %cst_8 {dimension_numbers = #tpu.dot_dimension_numbers<[1], [0], [0], [1], [0, 0, 1, 1], [], []>} : vector<2x256xbf16>, vector<256x1xbf16>, vector<2x1xf32> -> vector<2x1xf32>
    %c0_9 = arith.constant 0 : index
    %c0_10 = arith.constant 0 : index
    %16 = vector.load %arg5[%c0_9, %c0_10] : memref<2x1xf32, #tpu.memory_space<vmem>>, vector<2x1xf32>
    tpu.vector_store %arg5[%c0_9, %c0_10], %15 {strides = array<i32>} : memref<2x1xf32, #tpu.memory_space<vmem>>, vector<2x1xf32>,
    return
  }
  func.func @transform_0(%arg0: i32) -> (i32, i32) {
    %c0_i32 = arith.constant 0 : i32
    %c0_i32_0 = arith.constant 0 : i32
    return %arg0, %c0_i32 : i32, i32
  }
  func.func @transform_1(%arg0: i32) -> (i32, i32) {
    %c0_i32 = arith.constant 0 : i32
    %c0_i32_0 = arith.constant 0 : i32
    %c0_i32_1 = arith.constant 0 : i32
    return %c0_i32, %c0_i32_0 : i32, i32
  }
  func.func @transform_2(%arg0: i32) -> (i32, i32) {
    %c0_i32 = arith.constant 0 : i32
    %c0_i32_0 = arith.constant 0 : i32
    %c0_i32_1 = arith.constant 0 : i32
    return %c0_i32, %c0_i32_0 : i32, i32
  }
  func.func @transform_3(%arg0: i32) -> (i32, i32) {
    %c0_i32 = arith.constant 0 : i32
    %c0_i32_0 = arith.constant 0 : i32
    %c0_i32_1 = arith.constant 0 : i32
    return %c0_i32, %c0_i32_0 : i32, i32
  }
  func.func @transform_4(%arg0: i32) -> (i32, i32) {
    %c0_i32 = arith.constant 0 : i32
    %c0_i32_0 = arith.constant 0 : i32
    return %arg0, %c0_i32 : i32, i32
  }
}

</mosaic_0001>

<llo_original>
// kernel: discriminator_forward_pallas.5
$region0: #{discriminator_forward_pallas.5}
  #allocation0 [shape = 'u32[]', space=smem, size = 0x4, offset = 0x4, fixed_abs, tag = 'smem constant byte address 0x4 - core index']
  #allocation1 [shape = 'u32[144,128]{1,0:T(1,128)}', space=vmem, size = 0x12000, scoped, tag = 'internal scratch']
  %s0 = inlined_call_operand.vmem [shape: bf16[512,48], index: 0, kind: input, shape index: {}]
  %s1 = inlined_call_operand.vmem [shape: bf16[48,8], index: 1, kind: input, shape index: {}]
  %s2 = inlined_call_operand.vmem [shape: f32[1,48], index: 2, kind: input, shape index: {}]
  %s3 = inlined_call_operand.vmem [shape: f32[1,48], index: 3, kind: input, shape index: {}]
  %s4 = inlined_call_operand.vmem [shape: bf16[512,8], index: 4, kind: output, shape index: {}]
  %s5 = sld [smem:[#allocation0]]
  $region49: #{discriminator_forward_pallas.5} parent=0
    _
  %s7 = ssub.s32 1, %s5
  %s8 = scalar_select 0, %s7, %s5
  loop: start=0, step=1, limit=4
  $region2: #{discriminator_forward_pallas.5} parent=0 // loop_pre_header
    _
  $region3: #{discriminator_forward_pallas.5} parent=0 // loop_header
    %s10 = sphi 0, %s14
    %p11 = scmp.ge.s32.totalorder %s10, 4
    %s20 = sphi 0, %s22
    %s23 = sphi 0, %s20
    %s24 = sphi 0, %s23
    %s40 = sphi 0, %s24
    %s44 = sphi 0, %s44
    %s46 = sphi 0, %s44
    %s47 = sphi 0, %s46
    %s61 = sphi 0, %s47
    %s65 = sphi 0, %s65
    %s67 = sphi 0, %s65
    %s68 = sphi 0, %s67
    %s82 = sphi 0, %s68
    %s86 = sphi 0, %s86
    %s88 = sphi 0, %s86
    %s89 = sphi 0, %s88
    %s103 = sphi 0, %s89
    %s109 = sphi 0, %s111
    %s112 = sphi 0, %s109
    %s113 = sphi 0, %s112
    %s129 = sphi 0, %s113
  $region4: #{discriminator_forward_pallas.5} parent=0 // loop_header_branch
    %13 = sbr.rel (%p11) target = $region8
  $region5: #{discriminator_forward_pallas.5} parent=0 // loop_body
    %s15 = ssub.s32 %s10, 1
    %s16 = ssub.s32 %s10, 2
    %s17 = sadd.s32 %s10, 1
    %s18 = ssub.s32 %s10, %s17
    %p19 = scmp.eq.s32.totalorder %s18, 0
    %s21 = sadd.s32 %s20, 1
    %s22 = scalar_select %p19, %s20, %s21
    %p25 = pneg %p19
    %p26 = scmp.eq.s32.totalorder %s10, 1
    %p27 = por %p25, %p26
    %p28 = scmp.ne.s32.totalorder %s20, %s23
    %p29 = scmp.eq.s32.totalorder %s10, 0
    %p30 = por %p28, %p29
    %p31 = scmp.ne.s32.totalorder %s20, %s23
    %p32 = scmp.eq.s32.totalorder %s15, 1
    %p33 = por %p31, %p32
    %p34 = scmp.ne.s32.totalorder %s23, %s24
    %p35 = scmp.eq.s32.totalorder %s15, 0
    %p36 = por %p34, %p35
    %p37 = scmp.ne.s32.totalorder %s23, %s24
    %p38 = scmp.eq.s32.totalorder %s16, 1
    %p39 = por %p37, %p38
    %p41 = scmp.ne.s32.totalorder %s24, %s40
    %p42 = scmp.eq.s32.totalorder %s16, 0
    %p43 = por %p41, %p42
    %s45 = sadd.s32 %s44, 1
    %p48 = scmp.eq.s32.totalorder %s10, 1
    %p49 = scmp.ne.s32.totalorder %s44, %s46
    %p50 = scmp.eq.s32.totalorder %s10, 0
    %p51 = por %p49, %p50
    %p52 = scmp.ne.s32.totalorder %s44, %s46
    %p53 = scmp.eq.s32.totalorder %s15, 1
    %p54 = por %p52, %p53
    %p55 = scmp.ne.s32.totalorder %s46, %s47
    %p56 = scmp.eq.s32.totalorder %s15, 0
    %p57 = por %p55, %p56
    %p58 = scmp.ne.s32.totalorder %s46, %s47
    %p59 = scmp.eq.s32.totalorder %s16, 1
    %p60 = por %p58, %p59
    %p62 = scmp.ne.s32.totalorder %s47, %s61
    %p63 = scmp.eq.s32.totalorder %s16, 0
    %p64 = por %p62, %p63
    %s66 = sadd.s32 %s65, 1
    %p69 = scmp.eq.s32.totalorder %s10, 1
    %p70 = scmp.ne.s32.totalorder %s65, %s67
    %p71 = scmp.eq.s32.totalorder %s10, 0
    %p72 = por %p70, %p71
    %p73 = scmp.ne.s32.totalorder %s65, %s67
    %p74 = scmp.eq.s32.totalorder %s15, 1
    %p75 = por %p73, %p74
    %p76 = scmp.ne.s32.totalorder %s67, %s68
    %p77 = scmp.eq.s32.totalorder %s15, 0
    %p78 = por %p76, %p77
    %p79 = scmp.ne.s32.totalorder %s67, %s68
    %p80 = scmp.eq.s32.totalorder %s16, 1
    %p81 = por %p79, %p80
    %p83 = scmp.ne.s32.totalorder %s68, %s82
    %p84 = scmp.eq.s32.totalorder %s16, 0
    %p85 = por %p83, %p84
    %s87 = sadd.s32 %s86, 1
    %p90 = scmp.eq.s32.totalorder %s10, 1
    %p91 = scmp.ne.s32.totalorder %s86, %s88
    %p92 = scmp.eq.s32.totalorder %s10, 0
    %p93 = por %p91, %p92
    %p94 = scmp.ne.s32.totalorder %s86, %s88
    %p95 = scmp.eq.s32.totalorder %s15, 1
    %p96 = por %p94, %p95
    %p97 = scmp.ne.s32.totalorder %s88, %s89
    %p98 = scmp.eq.s32.totalorder %s15, 0
    %p99 = por %p97, %p98
    %p100 = scmp.ne.s32.totalorder %s88, %s89
    %p101 = scmp.eq.s32.totalorder %s16, 1
    %p102 = por %p100, %p101
    %p104 = scmp.ne.s32.totalorder %s89, %s103
    %p105 = scmp.eq.s32.totalorder %s16, 0
    %p106 = por %p104, %p105
    %s107 = ssub.s32 %s10, %s17
    %p108 = scmp.eq.s32.totalorder %s107, 0
    %s110 = sadd.s32 %s109, 1
    %s111 = scalar_select %p108, %s109, %s110
    %p114 = pneg %p108
    %p115 = scmp.eq.s32.totalorder %s10, 1
    %p116 = por %p114, %p115
    %p117 = scmp.ne.s32.totalorder %s109, %s112
    %p118 = scmp.eq.s32.totalorder %s10, 0
    %p119 = por %p117, %p118
    %p120 = scmp.ne.s32.totalorder %s109, %s112
    %p121 = scmp.eq.s32.totalorder %s15, 1
    %p122 = por %p120, %p121
    %p123 = scmp.ne.s32.totalorder %s112, %s113
    %p124 = scmp.eq.s32.totalorder %s15, 0
    %p125 = por %p123, %p124
    %p126 = scmp.ne.s32.totalorder %s112, %s113
    %p127 = scmp.eq.s32.totalorder %s16, 1
    %p128 = por %p126, %p127
    %p130 = scmp.ne.s32.totalorder %s113, %s129
    %p131 = scmp.eq.s32.totalorder %s16, 0
    %p132 = por %p130, %p131
    %p133 = scmp.le.s32.totalorder 1, %s10
    %p134 = scmp.lt.s32.totalorder %s10, 3
    %p135 = pnand %p133, %p134
    %p136 = pneg %p135
    // Predicated region
    $region9: #{discriminator_forward_pallas.5} parent=5 // pred_check
      _
    $region10: #{discriminator_forward_pallas.5} parent=5 // pred_check_branch
      %138 = sbr.rel (%p135) target = $region12
    $region11: #{discriminator_forward_pallas.5} parent=5 // pred_region
      %s139 = ssub.s32 %s10, 1
      // Predicated region
      $region13: #{discriminator_forward_pallas.5} parent=11 // pred_check
        %p140 = pneg %p57
      $region14: #{discriminator_forward_pallas.5} parent=11 // pred_check_branch
        %142 = sbr.rel (%p140) target = $region16
      $region15: #{discriminator_forward_pallas.5} parent=11 // pred_region
        _
      $region16: #{discriminator_forward_pallas.5} parent=11 // pred_fallthru
        _
      // Predicated region
      $region17: #{discriminator_forward_pallas.5} parent=11 // pred_check
        %p143 = pneg %p78
      $region18: #{discriminator_forward_pallas.5} parent=11 // pred_check_branch
        %145 = sbr.rel (%p143) target = $region20
      $region19: #{discriminator_forward_pallas.5} parent=11 // pred_region
        _
      $region20: #{discriminator_forward_pallas.5} parent=11 // pred_fallthru
        _
      // Predicated region
      $region21: #{discriminator_forward_pallas.5} parent=11 // pred_check
        %p146 = pneg %p99
      $region22: #{discriminator_forward_pallas.5} parent=11 // pred_check_branch
        %148 = sbr.rel (%p146) target = $region24
      $region23: #{discriminator_forward_pallas.5} parent=11 // pred_region
        _
      $region24: #{discriminator_forward_pallas.5} parent=11 // pred_fallthru
        _
    $region12: #{discriminator_forward_pallas.5} parent=5 // pred_fallthru
      _
    %p149 = scmp.lt.s32.totalorder %s10, 2
    // Predicated region
    $region25: #{discriminator_forward_pallas.5} parent=5 // pred_check
      %p150 = pneg %p149
    $region26: #{discriminator_forward_pallas.5} parent=5 // pred_check_branch
      %152 = sbr.rel (%p150) target = $region28
    $region27: #{discriminator_forward_pallas.5} parent=5 // pred_region
      // Predicated region
      $region29: #{discriminator_forward_pallas.5} parent=27 // pred_check
        %p153 = pneg %p30
      $region30: #{discriminator_forward_pallas.5} parent=27 // pred_check_branch
        %155 = sbr.rel (%p153) target = $region32
      $region31: #{discriminator_forward_pallas.5} parent=27 // pred_region
        %s156 = smul.u32 32, %s10
        %p157 = scmp.lt.s32.totalorder %s156, 63
        %s158 = scalar_select %p157, %s156, 63
        %s159 = smul.addr %s158, 4
        %s160 = scalar_lea.vmem %s0, %s159
        %s161 = smul.u32 32, %s10
      $region32: #{discriminator_forward_pallas.5} parent=27 // pred_fallthru
        _
    $region28: #{discriminator_forward_pallas.5} parent=5 // pred_fallthru
      _
    %p162 = scmp.le.s32.totalorder 1, %s10
    %p163 = scmp.lt.s32.totalorder %s10, 3
    %p164 = pnand %p162, %p163
    %p165 = pneg %p164
    // Predicated region
    $region33: #{discriminator_forward_pallas.5} parent=5 // pred_check
      _
    $region34: #{discriminator_forward_pallas.5} parent=5 // pred_check_branch
      %167 = sbr.rel (%p164) target = $region36
    $region35: #{discriminator_forward_pallas.5} parent=5 // pred_region
      %s168 = ssub.s32 %s10, 1
      %s169 = smul.u32 32, %s15
      %p170 = scmp.lt.s32.totalorder %s169, 63
      %s171 = scalar_select %p170, %s169, 63
      %s172 = smul.addr %s171, 4
      %s173 = scalar_lea.vmem %s0, %s172
      %p174 = pneg %p36
      %p175 = pneg %p33
      %p176 = pneg %p57
      %p177 = pneg %p54
      %p178 = pneg %p78
      %p179 = pneg %p75
      %p180 = pneg %p99
      %p181 = pneg %p96
      %p182 = pneg %p125
      %p183 = pneg %p122
      %s184 = smul.u32 32, %s15
      %p185 = scmp.lt.s32.totalorder %s184, 63
      %s186 = scalar_select %p185, %s184, 63
      %s187 = smul.addr %s186, 4
      %s188 = scalar_lea.vmem %s4, %s187
      %s189 = smul.u32 32, %s15
      %p190 = scmp.lt.s32.totalorder %s189, 63
      %s191 = scalar_select %p190, %s189, 63
      %s192 = smul.addr %s191, 4
      %s193 = scalar_lea.vmem %s0, %s192
      %s194 = smul.u32 32, %s15
      %s195 = smul.u32 32, %s15
      %p196 = scmp.lt.s32.totalorder %s195, 63
      %s197 = scalar_select %p196, %s195, 63
      %s198 = smul.addr %s197, 4
      %s199 = scalar_lea.vmem %s4, %s198
      %s200 = smul.u32 32, %s15
      %v202 = vld [vmem:[%s193] sm:$0xf]
      %v203 = vld [vmem:[%s193 + $0x4] sm:$0xf]
      %v204 = vld [vmem:[%s193 + $0x8] sm:$0xf]
      %v205 = vld [vmem:[%s193 + $0xc] sm:$0xf]
      %v206 = vld [vmem:[%s193 + $0x10] sm:$0xf]
      %v207 = vld [vmem:[%s193 + $0x14] sm:$0xf]
      %v208 = vld [vmem:[%s193 + $0x18] sm:$0xf]
      %v209 = vld [vmem:[%s193 + $0x1c] sm:$0xf]
      %v210 = vld [vmem:[%s193 + $0x20] sm:$0xf]
      %v211 = vld [vmem:[%s193 + $0x24] sm:$0xf]
      %v212 = vld [vmem:[%s193 + $0x28] sm:$0xf]
      %v213 = vld [vmem:[%s193 + $0x2c] sm:$0xf]
      %v214 = vld [vmem:[%s193 + $0x30] sm:$0xf]
      %v215 = vld [vmem:[%s193 + $0x34] sm:$0xf]
      %v216 = vld [vmem:[%s193 + $0x38] sm:$0xf]
      %v217 = vld [vmem:[%s193 + $0x3c] sm:$0xf]
      %v218 = vld [vmem:[%s193 + $0x40] sm:$0xf]
      %v219 = vld [vmem:[%s193 + $0x44] sm:$0xf]
      %v220 = vld [vmem:[%s193 + $0x48] sm:$0xf]
      %v221 = vld [vmem:[%s193 + $0x4c] sm:$0xf]
      %v222 = vld [vmem:[%s193 + $0x50] sm:$0xf]
      %v223 = vld [vmem:[%s193 + $0x54] sm:$0xf]
      %v224 = vld [vmem:[%s193 + $0x58] sm:$0xf]
      %v225 = vld [vmem:[%s193 + $0x5c] sm:$0xf]
      %v226 = vld [vmem:[%s193 + $0x60] sm:$0xf]
      %v227 = vld [vmem:[%s193 + $0x64] sm:$0xf]
      %v228 = vld [vmem:[%s193 + $0x68] sm:$0xf]
      %v229 = vld [vmem:[%s193 + $0x6c] sm:$0xf]
      %v230 = vld [vmem:[%s193 + $0x70] sm:$0xf]
      %v231 = vld [vmem:[%s193 + $0x74] sm:$0xf]
      %v232 = vld [vmem:[%s193 + $0x78] sm:$0xf]
      %v233 = vld [vmem:[%s193 + $0x7c] sm:$0xf]
      %v234 = vld [vmem:[%s1] sm:$0xf]
      %v235 = vld [vmem:[%s1 + $0x4] sm:$0xf]
      %v236 = vld [vmem:[%s1 + $0x8] sm:$0xf]
      %v237 = vld [vmem:[%s1 + $0xc] sm:$0xf]
      %v238 = vld [vmem:[%s1 + $0x10] sm:$0xf]
      %v239 = vld [vmem:[%s1 + $0x14] sm:$0xf]
      %v272 = vunpack.c.l.b16 %v202
      %v273 = vunpack.c.l.b16 %v203
      %v274 = vunpack.c.l.b16 %v204
      %v275 = vunpack.c.l.b16 %v205
      %v276 = vunpack.c.l.b16 %v206
      %v277 = vunpack.c.l.b16 %v207
      %v278 = vunpack.c.l.b16 %v208
      %v279 = vunpack.c.l.b16 %v209
      %v280 = vunpack.c.l.b16 %v210
      %v281 = vunpack.c.l.b16 %v211
      %v282 = vunpack.c.l.b16 %v212
      %v283 = vunpack.c.l.b16 %v213
      %v284 = vunpack.c.l.b16 %v214
      %v285 = vunpack.c.l.b16 %v215
      %v286 = vunpack.c.l.b16 %v216
      %v287 = vunpack.c.l.b16 %v217
      %v288 = vunpack.c.l.b16 %v218
      %v289 = vunpack.c.l.b16 %v219
      %v290 = vunpack.c.l.b16 %v220
      %v291 = vunpack.c.l.b16 %v221
      %v292 = vunpack.c.l.b16 %v222
      %v293 = vunpack.c.l.b16 %v223
      %v294 = vunpack.c.l.b16 %v224
      %v295 = vunpack.c.l.b16 %v225
      %v296 = vunpack.c.l.b16 %v226
      %v297 = vunpack.c.l.b16 %v227
      %v298 = vunpack.c.l.b16 %v228
      %v299 = vunpack.c.l.b16 %v229
      %v300 = vunpack.c.l.b16 %v230
      %v301 = vunpack.c.l.b16 %v231
      %v302 = vunpack.c.l.b16 %v232
      %v303 = vunpack.c.l.b16 %v233
      %v304 = vpack.c.b16 %v273, %v272
      %v305 = vpack.c.b16 %v275, %v274
      %v306 = vpack.c.b16 %v277, %v276
      %v307 = vpack.c.b16 %v279, %v278
      %v308 = vpack.c.b16 %v281, %v280
      %v309 = vpack.c.b16 %v283, %v282
      %v310 = vpack.c.b16 %v285, %v284
      %v311 = vpack.c.b16 %v287, %v286
      %v312 = vpack.c.b16 %v289, %v288
      %v313 = vpack.c.b16 %v291, %v290
      %v314 = vpack.c.b16 %v293, %v292
      %v315 = vpack.c.b16 %v295, %v294
      %v316 = vpack.c.b16 %v297, %v296
      %v317 = vpack.c.b16 %v299, %v298
      %v318 = vpack.c.b16 %v301, %v300
      %v319 = vpack.c.b16 %v303, %v302
      %v326 = vunpack.c.l.b16 %v234
      %v327 = vunpack.c.l.b16 %v235
      %v328 = vunpack.c.l.b16 %v236
      %v329 = vunpack.c.l.b16 %v237
      %v330 = vunpack.c.l.b16 %v238
      %v331 = vunpack.c.l.b16 %v239
      %v332 = vpack.c.b16 %v327, %v326
      %v333 = vpack.c.b16 %v329, %v328
      %v334 = vpack.c.b16 %v331, %v330
      %vm338 = vcmask 392192
      %v340 = vsel %vm338, %v304, 0
      %v343 = vsel %vm338, %v305, 0
      %v346 = vsel %vm338, %v306, 0
      %v349 = vsel %vm338, %v307, 0
      %v352 = vsel %vm338, %v308, 0
      %v355 = vsel %vm338, %v309, 0
      %v358 = vsel %vm338, %v310, 0
      %v361 = vsel %vm338, %v311, 0
      %v364 = vsel %vm338, %v312, 0
      %v367 = vsel %vm338, %v313, 0
      %v370 = vsel %vm338, %v314, 0
      %v373 = vsel %vm338, %v315, 0
      %v376 = vsel %vm338, %v316, 0
      %v379 = vsel %vm338, %v317, 0
      %v382 = vsel %vm338, %v318, 0
      %v385 = vsel %vm338, %v319, 0
      %387 = vmatprep.subr.bf16.mxu0 0
      %388 = vmatpush1.bf16.msra.mxu0 %v332
      %389 = vmatprep.subr.bf16.mxu0 0
      %390 = vmatpush1.bf16.msra.mxu0 %v333
      %391 = vmatprep.subr.bf16.mxu0 0
      %392 = vmatpush1.bf16.msra.mxu0 %v334
      %393 = vmatprep.subr.bf16.mxu0 0
      %394 = vmatpush1.bf16.msra.mxu0 0
      %395 = vmatprep.subr.bf16.mxu0 0
      %396 = vmatpush1.bf16.msra.mxu0 0
      %397 = vmatprep.subr.bf16.mxu0 0
      %398 = vmatpush1.bf16.msra.mxu0 0
      %399 = vmatprep.subr.bf16.mxu0 0
      %400 = vmatpush1.bf16.msra.mxu0 0
      %401 = vmatprep.subr.bf16.mxu0 0
      %402 = vmatpush1.bf16.msra.mxu0 0
      %403 = vmatprep.subr.bf16.mxu0 0
      %404 = vmatpush1.bf16.msra.mxu0 0
      %405 = vmatprep.subr.bf16.mxu0 0
      %406 = vmatpush1.bf16.msra.mxu0 0
      %407 = vmatprep.subr.bf16.mxu0 0
      %408 = vmatpush1.bf16.msra.mxu0 0
      %409 = vmatprep.subr.bf16.mxu0 0
      %410 = vmatpush1.bf16.msra.mxu0 0
      %411 = vmatprep.subr.bf16.mxu0 0
      %412 = vmatpush1.bf16.msra.mxu0 0
      %413 = vmatprep.subr.bf16.mxu0 0
      %414 = vmatpush1.bf16.msra.mxu0 0
      %415 = vmatprep.subr.bf16.mxu0 0
      %416 = vmatpush1.bf16.msra.mxu0 0
      %417 = vmatprep.subr.bf16.mxu0 0
      %418 = vmatpush1.bf16.msra.mxu0 0
      %419 = vmatprep.mubr.bf16.mxu0 0
      %420 = vmatmul.mubr.bf16.gmra.mrb[0].mxu0 %v340
      %v421 = vpop.f32.mrb[0].mxu0
      %v422 = vadd.f32 0.0, %v421
      %v423 = vpop.f32.mrb[0].mxu0
      %v424 = vpop.f32.mrb[0].mxu0
      %v425 = vadd.f32 0.0, %v424
      %v426 = vpop.f32.mrb[0].mxu0
      %427 = vmatprep.mubr.bf16.mxu0 0
      %428 = vmatmul.mubr.bf16.gmra.mrb[0].mxu0 %v343
      %v429 = vpop.f32.mrb[0].mxu0
      %v430 = vadd.f32 0.0, %v429
      %v431 = vpop.f32.mrb[0].mxu0
      %v432 = vpop.f32.mrb[0].mxu0
      %v433 = vadd.f32 0.0, %v432
      %v434 = vpop.f32.mrb[0].mxu0
      %435 = vmatprep.mubr.bf16.mxu0 0
      %436 = vmatmul.mubr.bf16.gmra.mrb[0].mxu0 %v346
      %v437 = vpop.f32.mrb[0].mxu0
      %v438 = vadd.f32 0.0, %v437
      %v439 = vpop.f32.mrb[0].mxu0
      %v440 = vpop.f32.mrb[0].mxu0
      %v441 = vadd.f32 0.0, %v440
      %v442 = vpop.f32.mrb[0].mxu0
      %443 = vmatprep.mubr.bf16.mxu0 0
      %444 = vmatmul.mubr.bf16.gmra.mrb[0].mxu0 %v349
      %v445 = vpop.f32.mrb[0].mxu0
      %v446 = vadd.f32 0.0, %v445
      %v447 = vpop.f32.mrb[0].mxu0
      %v448 = vpop.f32.mrb[0].mxu0
      %v449 = vadd.f32 0.0, %v448
      %v450 = vpop.f32.mrb[0].mxu0
      %451 = vmatprep.mubr.bf16.mxu0 0
      %452 = vmatmul.mubr.bf16.gmra.mrb[0].mxu0 %v352
      %v453 = vpop.f32.mrb[0].mxu0
      %v454 = vadd.f32 0.0, %v453
      %v455 = vpop.f32.mrb[0].mxu0
      %v456 = vpop.f32.mrb[0].mxu0
      %v457 = vadd.f32 0.0, %v456
      %v458 = vpop.f32.mrb[0].mxu0
      %459 = vmatprep.mubr.bf16.mxu0 0
      %460 = vmatmul.mubr.bf16.gmra.mrb[0].mxu0 %v355
      %v461 = vpop.f32.mrb[0].mxu0
      %v462 = vadd.f32 0.0, %v461
      %v463 = vpop.f32.mrb[0].mxu0
      %v464 = vpop.f32.mrb[0].mxu0
      %v465 = vadd.f32 0.0, %v464
      %v466 = vpop.f32.mrb[0].mxu0
      %467 = vmatprep.mubr.bf16.mxu0 0
      %468 = vmatmul.mubr.bf16.gmra.mrb[0].mxu0 %v358
      %v469 = vpop.f32.mrb[0].mxu0
      %v470 = vadd.f32 0.0, %v469
      %v471 = vpop.f32.mrb[0].mxu0
      %v472 = vpop.f32.mrb[0].mxu0
      %v473 = vadd.f32 0.0, %v472
      %v474 = vpop.f32.mrb[0].mxu0
      %475 = vmatprep.mubr.bf16.mxu0 0
      %476 = vmatmul.mubr.bf16.gmra.mrb[0].mxu0 %v361
      %v477 = vpop.f32.mrb[0].mxu0
      %v478 = vadd.f32 0.0, %v477
      %v479 = vpop.f32.mrb[0].mxu0
      %v480 = vpop.f32.mrb[0].mxu0
      %v481 = vadd.f32 0.0, %v480
      %v482 = vpop.f32.mrb[0].mxu0
      %483 = vmatprep.mubr.bf16.mxu0 0
      %484 = vmatmul.mubr.bf16.gmra.mrb[0].mxu0 %v364
      %v485 = vpop.f32.mrb[0].mxu0
      %v486 = vadd.f32 0.0, %v485
      %v487 = vpop.f32.mrb[0].mxu0
      %v488 = vpop.f32.mrb[0].mxu0
      %v489 = vadd.f32 0.0, %v488
      %v490 = vpop.f32.mrb[0].mxu0
      %491 = vmatprep.mubr.bf16.mxu0 0
      %492 = vmatmul.mubr.bf16.gmra.mrb[0].mxu0 %v367
      %v493 = vpop.f32.mrb[0].mxu0
      %v494 = vadd.f32 0.0, %v493
      %v495 = vpop.f32.mrb[0].mxu0
      %v496 = vpop.f32.mrb[0].mxu0
      %v497 = vadd.f32 0.0, %v496
      %v498 = vpop.f32.mrb[0].mxu0
      %499 = vmatprep.mubr.bf16.mxu0 0
      %500 = vmatmul.mubr.bf16.gmra.mrb[0].mxu0 %v370
      %v501 = vpop.f32.mrb[0].mxu0
      %v502 = vadd.f32 0.0, %v501
      %v503 = vpop.f32.mrb[0].mxu0
      %v504 = vpop.f32.mrb[0].mxu0
      %v505 = vadd.f32 0.0, %v504
      %v506 = vpop.f32.mrb[0].mxu0
      %507 = vmatprep.mubr.bf16.mxu0 0
      %508 = vmatmul.mubr.bf16.gmra.mrb[0].mxu0 %v373
      %v509 = vpop.f32.mrb[0].mxu0
      %v510 = vadd.f32 0.0, %v509
      %v511 = vpop.f32.mrb[0].mxu0
      %v512 = vpop.f32.mrb[0].mxu0
      %v513 = vadd.f32 0.0, %v512
      %v514 = vpop.f32.mrb[0].mxu0
      %515 = vmatprep.mubr.bf16.mxu0 0
      %516 = vmatmul.mubr.bf16.gmra.mrb[0].mxu0 %v376
      %v517 = vpop.f32.mrb[0].mxu0
      %v518 = vadd.f32 0.0, %v517
      %v519 = vpop.f32.mrb[0].mxu0
      %v520 = vpop.f32.mrb[0].mxu0
      %v521 = vadd.f32 0.0, %v520
      %v522 = vpop.f32.mrb[0].mxu0
      %523 = vmatprep.mubr.bf16.mxu0 0
      %524 = vmatmul.mubr.bf16.gmra.mrb[0].mxu0 %v379
      %v525 = vpop.f32.mrb[0].mxu0
      %v526 = vadd.f32 0.0, %v525
      %v527 = vpop.f32.mrb[0].mxu0
      %v528 = vpop.f32.mrb[0].mxu0
      %v529 = vadd.f32 0.0, %v528
      %v530 = vpop.f32.mrb[0].mxu0
      %531 = vmatprep.mubr.bf16.mxu0 0
      %532 = vmatmul.mubr.bf16.gmra.mrb[0].mxu0 %v382
      %v533 = vpop.f32.mrb[0].mxu0
      %v534 = vadd.f32 0.0, %v533
      %v535 = vpop.f32.mrb[0].mxu0
      %v536 = vpop.f32.mrb[0].mxu0
      %v537 = vadd.f32 0.0, %v536
      %v538 = vpop.f32.mrb[0].mxu0
      %539 = vmatprep.mubr.bf16.mxu0 0
      %540 = vmatmul.mubr.bf16.gmra.mrb[0].mxu0 %v385
      %v541 = vpop.f32.mrb[0].mxu0
      %v542 = vadd.f32 0.0, %v541
      %v543 = vpop.f32.mrb[0].mxu0
      %v544 = vpop.f32.mrb[0].mxu0
      %v545 = vadd.f32 0.0, %v544
      %v546 = vpop.f32.mrb[0].mxu0
      %547 = vdwg.mxu0
      %v548 = vpack.c.bf16 %v425, %v422
      %v549 = vpack.c.bf16 %v433, %v430
      %v550 = vpack.c.bf16 %v441, %v438
      %v551 = vpack.c.bf16 %v449, %v446
      %v552 = vpack.c.bf16 %v457, %v454
      %v553 = vpack.c.bf16 %v465, %v462
      %v554 = vpack.c.bf16 %v473, %v470
      %v555 = vpack.c.bf16 %v481, %v478
      %v556 = vpack.c.bf16 %v489, %v486
      %v557 = vpack.c.bf16 %v497, %v494
      %v558 = vpack.c.bf16 %v505, %v502
      %v559 = vpack.c.bf16 %v513, %v510
      %v560 = vpack.c.bf16 %v521, %v518
      %v561 = vpack.c.bf16 %v529, %v526
      %v562 = vpack.c.bf16 %v537, %v534
      %v563 = vpack.c.bf16 %v545, %v542
      %v580 = vunpack.c.l.b16 %v548
      %v581 = vunpack.c.h.b16 %v548
      %v582 = vunpack.c.l.b16 %v549
      %v583 = vunpack.c.h.b16 %v549
      %v584 = vunpack.c.l.b16 %v550
      %v585 = vunpack.c.h.b16 %v550
      %v586 = vunpack.c.l.b16 %v551
      %v587 = vunpack.c.h.b16 %v551
      %v588 = vunpack.c.l.b16 %v552
      %v589 = vunpack.c.h.b16 %v552
      %v590 = vunpack.c.l.b16 %v553
      %v591 = vunpack.c.h.b16 %v553
      %v592 = vunpack.c.l.b16 %v554
      %v593 = vunpack.c.h.b16 %v554
      %v594 = vunpack.c.l.b16 %v555
      %v595 = vunpack.c.h.b16 %v555
      %v596 = vunpack.c.l.b16 %v556
      %v597 = vunpack.c.h.b16 %v556
      %v598 = vunpack.c.l.b16 %v557
      %v599 = vunpack.c.h.b16 %v557
      %v600 = vunpack.c.l.b16 %v558
      %v601 = vunpack.c.h.b16 %v558
      %v602 = vunpack.c.l.b16 %v559
      %v603 = vunpack.c.h.b16 %v559
      %v604 = vunpack.c.l.b16 %v560
      %v605 = vunpack.c.h.b16 %v560
      %v606 = vunpack.c.l.b16 %v561
      %v607 = vunpack.c.h.b16 %v561
      %v608 = vunpack.c.l.b16 %v562
      %v609 = vunpack.c.h.b16 %v562
      %v610 = vunpack.c.l.b16 %v563
      %v611 = vunpack.c.h.b16 %v563
      %v612 = vpack.c.b16 %v580, %v580
      %v613 = vpack.c.b16 %v581, %v581
      %v614 = vpack.c.b16 %v582, %v582
      %v615 = vpack.c.b16 %v583, %v583
      %v616 = vpack.c.b16 %v584, %v584
      %v617 = vpack.c.b16 %v585, %v585
      %v618 = vpack.c.b16 %v586, %v586
      %v619 = vpack.c.b16 %v587, %v587
      %v620 = vpack.c.b16 %v588, %v588
      %v621 = vpack.c.b16 %v589, %v589
      %v622 = vpack.c.b16 %v590, %v590
      %v623 = vpack.c.b16 %v591, %v591
      %v624 = vpack.c.b16 %v592, %v592
      %v625 = vpack.c.b16 %v593, %v593
      %v626 = vpack.c.b16 %v594, %v594
      %v627 = vpack.c.b16 %v595, %v595
      %v628 = vpack.c.b16 %v596, %v596
      %v629 = vpack.c.b16 %v597, %v597
      %v630 = vpack.c.b16 %v598, %v598
      %v631 = vpack.c.b16 %v599, %v599
      %v632 = vpack.c.b16 %v600, %v600
      %v633 = vpack.c.b16 %v601, %v601
      %v634 = vpack.c.b16 %v602, %v602
      %v635 = vpack.c.b16 %v603, %v603
      %v636 = vpack.c.b16 %v604, %v604
      %v637 = vpack.c.b16 %v605, %v605
      %v638 = vpack.c.b16 %v606, %v606
      %v639 = vpack.c.b16 %v607, %v607
      %v640 = vpack.c.b16 %v608, %v608
      %v641 = vpack.c.b16 %v609, %v609
      %v642 = vpack.c.b16 %v610, %v610
      %v643 = vpack.c.b16 %v611, %v611
      %vm676 = vcmask 60416
      %677 = vst.msk [vmem:[%s199] sm:$0xf] %vm676, %v612
      %678 = vst.msk [vmem:[%s199 + $0x4] sm:$0xf] %vm676, %v613
      %679 = vst.msk [vmem:[%s199 + $0x8] sm:$0xf] %vm676, %v614
      %680 = vst.msk [vmem:[%s199 + $0xc] sm:$0xf] %vm676, %v615
      %681 = vst.msk [vmem:[%s199 + $0x10] sm:$0xf] %vm676, %v616
      %682 = vst.msk [vmem:[%s199 + $0x14] sm:$0xf] %vm676, %v617
      %683 = vst.msk [vmem:[%s199 + $0x18] sm:$0xf] %vm676, %v618
      %684 = vst.msk [vmem:[%s199 + $0x1c] sm:$0xf] %vm676, %v619
      %685 = vst.msk [vmem:[%s199 + $0x20] sm:$0xf] %vm676, %v620
      %686 = vst.msk [vmem:[%s199 + $0x24] sm:$0xf] %vm676, %v621
      %687 = vst.msk [vmem:[%s199 + $0x28] sm:$0xf] %vm676, %v622
      %688 = vst.msk [vmem:[%s199 + $0x2c] sm:$0xf] %vm676, %v623
      %689 = vst.msk [vmem:[%s199 + $0x30] sm:$0xf] %vm676, %v624
      %690 = vst.msk [vmem:[%s199 + $0x34] sm:$0xf] %vm676, %v625
      %691 = vst.msk [vmem:[%s199 + $0x38] sm:$0xf] %vm676, %v626
      %692 = vst.msk [vmem:[%s199 + $0x3c] sm:$0xf] %vm676, %v627
      %693 = vst.msk [vmem:[%s199 + $0x40] sm:$0xf] %vm676, %v628
      %694 = vst.msk [vmem:[%s199 + $0x44] sm:$0xf] %vm676, %v629
      %695 = vst.msk [vmem:[%s199 + $0x48] sm:$0xf] %vm676, %v630
      %696 = vst.msk [vmem:[%s199 + $0x4c] sm:$0xf] %vm676, %v631
      %697 = vst.msk [vmem:[%s199 + $0x50] sm:$0xf] %vm676, %v632
      %698 = vst.msk [vmem:[%s199 + $0x54] sm:$0xf] %vm676, %v633
      %699 = vst.msk [vmem:[%s199 + $0x58] sm:$0xf] %vm676, %v634
      %700 = vst.msk [vmem:[%s199 + $0x5c] sm:$0xf] %vm676, %v635
      %701 = vst.msk [vmem:[%s199 + $0x60] sm:$0xf] %vm676, %v636
      %702 = vst.msk [vmem:[%s199 + $0x64] sm:$0xf] %vm676, %v637
      %703 = vst.msk [vmem:[%s199 + $0x68] sm:$0xf] %vm676, %v638
      %704 = vst.msk [vmem:[%s199 + $0x6c] sm:$0xf] %vm676, %v639
      %705 = vst.msk [vmem:[%s199 + $0x70] sm:$0xf] %vm676, %v640
      %706 = vst.msk [vmem:[%s199 + $0x74] sm:$0xf] %vm676, %v641
      %707 = vst.msk [vmem:[%s199 + $0x78] sm:$0xf] %vm676, %v642
      %708 = vst.msk [vmem:[%s199 + $0x7c] sm:$0xf] %vm676, %v643
      %s709 = smul.u32 32, %s15
      %p710 = scmp.lt.s32.totalorder %s709, 63
      %s711 = scalar_select %p710, %s709, 63
      %s712 = smul.addr %s711, 4
      %s713 = scalar_lea.vmem %s4, %s712
      // Predicated region
      $region37: #{discriminator_forward_pallas.5} parent=35 // pred_check
        %p714 = pneg %p122
      $region38: #{discriminator_forward_pallas.5} parent=35 // pred_check_branch
        %716 = sbr.rel (%p714) target = $region40
      $region39: #{discriminator_forward_pallas.5} parent=35 // pred_region
        %s717 = smul.u32 32, %s15
      $region40: #{discriminator_forward_pallas.5} parent=35 // pred_fallthru
        _
    $region36: #{discriminator_forward_pallas.5} parent=5 // pred_fallthru
      _
    %p718 = scmp.le.s32.totalorder 2, %s10
    // Predicated region
    $region41: #{discriminator_forward_pallas.5} parent=5 // pred_check
      %p719 = pneg %p718
    $region42: #{discriminator_forward_pallas.5} parent=5 // pred_check_branch
      %721 = sbr.rel (%p719) target = $region44
    $region43: #{discriminator_forward_pallas.5} parent=5 // pred_region
      %s722 = ssub.s32 %s10, 2
      // Predicated region
      $region45: #{discriminator_forward_pallas.5} parent=43 // pred_check
        %p723 = pneg %p128
      $region46: #{discriminator_forward_pallas.5} parent=43 // pred_check_branch
        %725 = sbr.rel (%p723) target = $region48
      $region47: #{discriminator_forward_pallas.5} parent=43 // pred_region
        %s726 = smul.u32 32, %s16
        %p727 = scmp.lt.s32.totalorder %s726, 63
        %s728 = scalar_select %p727, %s726, 63
        %s729 = smul.addr %s728, 4
        %s730 = scalar_lea.vmem %s4, %s729
      $region48: #{discriminator_forward_pallas.5} parent=43 // pred_fallthru
        _
    $region44: #{discriminator_forward_pallas.5} parent=5 // pred_fallthru
      _
  $region6: #{discriminator_forward_pallas.5} parent=0 // loop_footer
    %s14 = sadd.s32 1, %s10
  $region7: #{discriminator_forward_pallas.5} parent=0 // loop_footer_branch
    %9 = sbr.rel target = $region3
  $region8: #{discriminator_forward_pallas.5} parent=0 // loop_exit
    _

// kernel: discriminator_forward_pallas.6
$region0: #{discriminator_forward_pallas.6}
  #allocation0 [shape = 'u32[]', space=smem, size = 0x4, offset = 0x4, fixed_abs, tag = 'smem constant byte address 0x4 - core index']
  #allocation1 [shape = 'u32[144,128]{1,0:T(1,128)}', space=vmem, size = 0x12000, scoped, tag = 'internal scratch']
  %s0 = inlined_call_operand.vmem [shape: bf16[128,128], index: 0, kind: input, shape index: {}]
  %s1 = inlined_call_operand.vmem [shape: bf16[128,16], index: 1, kind: input, shape index: {}]
  %s2 = inlined_call_operand.vmem [shape: f32[1,128], index: 2, kind: input, shape index: {}]
  %s3 = inlined_call_operand.vmem [shape: f32[1,128], index: 3, kind: input, shape index: {}]
  %s4 = inlined_call_operand.vmem [shape: bf16[128,16], index: 4, kind: output, shape index: {0}]
  %s5 = inlined_call_operand.vmem [shape: f32[1,16], index: 5, kind: output, shape index: {1}]
  %s6 = inlined_call_operand.vmem [shape: f32[1,16], index: 6, kind: output, shape index: {2}]
  %7 = xla_tuple %s4, %s5, %s6
  %s8 = sld [smem:[#allocation0]]
  $region69: #{discriminator_forward_pallas.6} parent=0
    _
  %s10 = ssub.s32 1, %s8
  %s11 = scalar_select 0, %s10, %s8
  loop: start=0, step=1, limit=4
  $region2: #{discriminator_forward_pallas.6} parent=0 // loop_pre_header
    _
  $region3: #{discriminator_forward_pallas.6} parent=0 // loop_header
    %s13 = sphi 0, %s17
    %p14 = scmp.ge.s32.totalorder %s13, 4
    %s23 = sphi 0, %s25
    %s26 = sphi 0, %s23
    %s27 = sphi 0, %s26
    %s43 = sphi 0, %s27
    %s47 = sphi 0, %s47
    %s49 = sphi 0, %s47
    %s50 = sphi 0, %s49
    %s64 = sphi 0, %s50
    %s68 = sphi 0, %s68
    %s70 = sphi 0, %s68
    %s71 = sphi 0, %s70
    %s85 = sphi 0, %s71
    %s89 = sphi 0, %s89
    %s91 = sphi 0, %s89
    %s92 = sphi 0, %s91
    %s106 = sphi 0, %s92
    %s112 = sphi 0, %s114
    %s115 = sphi 0, %s112
    %s116 = sphi 0, %s115
    %s132 = sphi 0, %s116
    %s136 = sphi 0, %s136
    %s138 = sphi 0, %s136
    %s139 = sphi 0, %s138
    %s153 = sphi 0, %s139
    %s157 = sphi 0, %s157
    %s159 = sphi 0, %s157
    %s160 = sphi 0, %s159
    %s174 = sphi 0, %s160
  $region4: #{discriminator_forward_pallas.6} parent=0 // loop_header_branch
    %16 = sbr.rel (%p14) target = $region8
  $region5: #{discriminator_forward_pallas.6} parent=0 // loop_body
    %s18 = ssub.s32 %s13, 1
    %s19 = ssub.s32 %s13, 2
    %s20 = sadd.s32 %s13, 1
    %s21 = ssub.s32 %s13, %s20
    %p22 = scmp.eq.s32.totalorder %s21, 0
    %s24 = sadd.s32 %s23, 1
    %s25 = scalar_select %p22, %s23, %s24
    %p28 = pneg %p22
    %p29 = scmp.eq.s32.totalorder %s13, 1
    %p30 = por %p28, %p29
    %p31 = scmp.ne.s32.totalorder %s23, %s26
    %p32 = scmp.eq.s32.totalorder %s13, 0
    %p33 = por %p31, %p32
    %p34 = scmp.ne.s32.totalorder %s23, %s26
    %p35 = scmp.eq.s32.totalorder %s18, 1
    %p36 = por %p34, %p35
    %p37 = scmp.ne.s32.totalorder %s26, %s27
    %p38 = scmp.eq.s32.totalorder %s18, 0
    %p39 = por %p37, %p38
    %p40 = scmp.ne.s32.totalorder %s26, %s27
    %p41 = scmp.eq.s32.totalorder %s19, 1
    %p42 = por %p40, %p41
    %p44 = scmp.ne.s32.totalorder %s27, %s43
    %p45 = scmp.eq.s32.totalorder %s19, 0
    %p46 = por %p44, %p45
    %s48 = sadd.s32 %s47, 1
    %p51 = scmp.eq.s32.totalorder %s13, 1
    %p52 = scmp.ne.s32.totalorder %s47, %s49
    %p53 = scmp.eq.s32.totalorder %s13, 0
    %p54 = por %p52, %p53
    %p55 = scmp.ne.s32.totalorder %s47, %s49
    %p56 = scmp.eq.s32.totalorder %s18, 1
    %p57 = por %p55, %p56
    %p58 = scmp.ne.s32.totalorder %s49, %s50
    %p59 = scmp.eq.s32.totalorder %s18, 0
    %p60 = por %p58, %p59
    %p61 = scmp.ne.s32.totalorder %s49, %s50
    %p62 = scmp.eq.s32.totalorder %s19, 1
    %p63 = por %p61, %p62
    %p65 = scmp.ne.s32.totalorder %s50, %s64
    %p66 = scmp.eq.s32.totalorder %s19, 0
    %p67 = por %p65, %p66
    %s69 = sadd.s32 %s68, 1
    %p72 = scmp.eq.s32.totalorder %s13, 1
    %p73 = scmp.ne.s32.totalorder %s68, %s70
    %p74 = scmp.eq.s32.totalorder %s13, 0
    %p75 = por %p73, %p74
    %p76 = scmp.ne.s32.totalorder %s68, %s70
    %p77 = scmp.eq.s32.totalorder %s18, 1
    %p78 = por %p76, %p77
    %p79 = scmp.ne.s32.totalorder %s70, %s71
    %p80 = scmp.eq.s32.totalorder %s18, 0
    %p81 = por %p79, %p80
    %p82 = scmp.ne.s32.totalorder %s70, %s71
    %p83 = scmp.eq.s32.totalorder %s19, 1
    %p84 = por %p82, %p83
    %p86 = scmp.ne.s32.totalorder %s71, %s85
    %p87 = scmp.eq.s32.totalorder %s19, 0
    %p88 = por %p86, %p87
    %s90 = sadd.s32 %s89, 1
    %p93 = scmp.eq.s32.totalorder %s13, 1
    %p94 = scmp.ne.s32.totalorder %s89, %s91
    %p95 = scmp.eq.s32.totalorder %s13, 0
    %p96 = por %p94, %p95
    %p97 = scmp.ne.s32.totalorder %s89, %s91
    %p98 = scmp.eq.s32.totalorder %s18, 1
    %p99 = por %p97, %p98
    %p100 = scmp.ne.s32.totalorder %s91, %s92
    %p101 = scmp.eq.s32.totalorder %s18, 0
    %p102 = por %p100, %p101
    %p103 = scmp.ne.s32.totalorder %s91, %s92
    %p104 = scmp.eq.s32.totalorder %s19, 1
    %p105 = por %p103, %p104
    %p107 = scmp.ne.s32.totalorder %s92, %s106
    %p108 = scmp.eq.s32.totalorder %s19, 0
    %p109 = por %p107, %p108
    %s110 = ssub.s32 %s13, %s20
    %p111 = scmp.eq.s32.totalorder %s110, 0
    %s113 = sadd.s32 %s112, 1
    %s114 = scalar_select %p111, %s112, %s113
    %p117 = pneg %p111
    %p118 = scmp.eq.s32.totalorder %s13, 1
    %p119 = por %p117, %p118
    %p120 = scmp.ne.s32.totalorder %s112, %s115
    %p121 = scmp.eq.s32.totalorder %s13, 0
    %p122 = por %p120, %p121
    %p123 = scmp.ne.s32.totalorder %s112, %s115
    %p124 = scmp.eq.s32.totalorder %s18, 1
    %p125 = por %p123, %p124
    %p126 = scmp.ne.s32.totalorder %s115, %s116
    %p127 = scmp.eq.s32.totalorder %s18, 0
    %p128 = por %p126, %p127
    %p129 = scmp.ne.s32.totalorder %s115, %s116
    %p130 = scmp.eq.s32.totalorder %s19, 1
    %p131 = por %p129, %p130
    %p133 = scmp.ne.s32.totalorder %s116, %s132
    %p134 = scmp.eq.s32.totalorder %s19, 0
    %p135 = por %p133, %p134
    %s137 = sadd.s32 %s136, 1
    %p140 = scmp.eq.s32.totalorder %s13, 1
    %p141 = scmp.ne.s32.totalorder %s136, %s138
    %p142 = scmp.eq.s32.totalorder %s13, 0
    %p143 = por %p141, %p142
    %p144 = scmp.ne.s32.totalorder %s136, %s138
    %p145 = scmp.eq.s32.totalorder %s18, 1
    %p146 = por %p144, %p145
    %p147 = scmp.ne.s32.totalorder %s138, %s139
    %p148 = scmp.eq.s32.totalorder %s18, 0
    %p149 = por %p147, %p148
    %p150 = scmp.ne.s32.totalorder %s138, %s139
    %p151 = scmp.eq.s32.totalorder %s19, 1
    %p152 = por %p150, %p151
    %p154 = scmp.ne.s32.totalorder %s139, %s153
    %p155 = scmp.eq.s32.totalorder %s19, 0
    %p156 = por %p154, %p155
    %s158 = sadd.s32 %s157, 1
    %p161 = scmp.eq.s32.totalorder %s13, 1
    %p162 = scmp.ne.s32.totalorder %s157, %s159
    %p163 = scmp.eq.s32.totalorder %s13, 0
    %p164 = por %p162, %p163
    %p165 = scmp.ne.s32.totalorder %s157, %s159
    %p166 = scmp.eq.s32.totalorder %s18, 1
    %p167 = por %p165, %p166
    %p168 = scmp.ne.s32.totalorder %s159, %s160
    %p169 = scmp.eq.s32.totalorder %s18, 0
    %p170 = por %p168, %p169
    %p171 = scmp.ne.s32.totalorder %s159, %s160
    %p172 = scmp.eq.s32.totalorder %s19, 1
    %p173 = por %p171, %p172
    %p175 = scmp.ne.s32.totalorder %s160, %s174
    %p176 = scmp.eq.s32.totalorder %s19, 0
    %p177 = por %p175, %p176
    %p178 = scmp.le.s32.totalorder 1, %s13
    %p179 = scmp.lt.s32.totalorder %s13, 3
    %p180 = pnand %p178, %p179
    %p181 = pneg %p180
    // Predicated region
    $region9: #{discriminator_forward_pallas.6} parent=5 // pred_check
      _
    $region10: #{discriminator_forward_pallas.6} parent=5 // pred_check_branch
      %183 = sbr.rel (%p180) target = $region12
    $region11: #{discriminator_forward_pallas.6} parent=5 // pred_region
      %s184 = ssub.s32 %s13, 1
      // Predicated region
      $region13: #{discriminator_forward_pallas.6} parent=11 // pred_check
        %p185 = pneg %p60
      $region14: #{discriminator_forward_pallas.6} parent=11 // pred_check_branch
        %187 = sbr.rel (%p185) target = $region16
      $region15: #{discriminator_forward_pallas.6} parent=11 // pred_region
        _
      $region16: #{discriminator_forward_pallas.6} parent=11 // pred_fallthru
        _
      // Predicated region
      $region17: #{discriminator_forward_pallas.6} parent=11 // pred_check
        %p188 = pneg %p81
      $region18: #{discriminator_forward_pallas.6} parent=11 // pred_check_branch
        %190 = sbr.rel (%p188) target = $region20
      $region19: #{discriminator_forward_pallas.6} parent=11 // pred_region
        _
      $region20: #{discriminator_forward_pallas.6} parent=11 // pred_fallthru
        _
      // Predicated region
      $region21: #{discriminator_forward_pallas.6} parent=11 // pred_check
        %p191 = pneg %p102
      $region22: #{discriminator_forward_pallas.6} parent=11 // pred_check_branch
        %193 = sbr.rel (%p191) target = $region24
      $region23: #{discriminator_forward_pallas.6} parent=11 // pred_region
        _
      $region24: #{discriminator_forward_pallas.6} parent=11 // pred_fallthru
        _
    $region12: #{discriminator_forward_pallas.6} parent=5 // pred_fallthru
      _
    %p194 = scmp.lt.s32.totalorder %s13, 2
    // Predicated region
    $region25: #{discriminator_forward_pallas.6} parent=5 // pred_check
      %p195 = pneg %p194
    $region26: #{discriminator_forward_pallas.6} parent=5 // pred_check_branch
      %197 = sbr.rel (%p195) target = $region28
    $region27: #{discriminator_forward_pallas.6} parent=5 // pred_region
      // Predicated region
      $region29: #{discriminator_forward_pallas.6} parent=27 // pred_check
        %p198 = pneg %p33
      $region30: #{discriminator_forward_pallas.6} parent=27 // pred_check_branch
        %200 = sbr.rel (%p198) target = $region32
      $region31: #{discriminator_forward_pallas.6} parent=27 // pred_region
        %s201 = smul.u32 8, %s13
        %p202 = scmp.lt.s32.totalorder %s201, 15
        %s203 = scalar_select %p202, %s201, 15
        %s204 = smul.addr %s203, 4
        %s205 = scalar_lea.vmem %s0, %s204
        %s206 = smul.u32 8, %s13
      $region32: #{discriminator_forward_pallas.6} parent=27 // pred_fallthru
        _
    $region28: #{discriminator_forward_pallas.6} parent=5 // pred_fallthru
      _
    %p207 = scmp.le.s32.totalorder 1, %s13
    %p208 = scmp.lt.s32.totalorder %s13, 3
    %p209 = pnand %p207, %p208
    %p210 = pneg %p209
    // Predicated region
    $region33: #{discriminator_forward_pallas.6} parent=5 // pred_check
      _
    $region34: #{discriminator_forward_pallas.6} parent=5 // pred_check_branch
      %212 = sbr.rel (%p209) target = $region36
    $region35: #{discriminator_forward_pallas.6} parent=5 // pred_region
      %s213 = ssub.s32 %s13, 1
      %s214 = smul.u32 8, %s18
      %p215 = scmp.lt.s32.totalorder %s214, 15
      %s216 = scalar_select %p215, %s214, 15
      %s217 = smul.addr %s216, 4
      %s218 = scalar_lea.vmem %s0, %s217
      %p219 = pneg %p39
      %p220 = pneg %p36
      %p221 = pneg %p60
      %p222 = pneg %p57
      %p223 = pneg %p81
      %p224 = pneg %p78
      %p225 = pneg %p102
      %p226 = pneg %p99
      %p227 = pneg %p128
      %p228 = pneg %p125
      %s229 = smul.u32 8, %s18
      %p230 = scmp.lt.s32.totalorder %s229, 15
      %s231 = scalar_select %p230, %s229, 15
      %s232 = smul.addr %s231, 4
      %s233 = scalar_lea.vmem %s4, %s232
      %p234 = pneg %p149
      %p235 = pneg %p146
      %p236 = pneg %p170
      %p237 = pneg %p167
      %s238 = smul.u32 8, %s18
      %p239 = scmp.lt.s32.totalorder %s238, 15
      %s240 = scalar_select %p239, %s238, 15
      %s241 = smul.addr %s240, 4
      %s242 = scalar_lea.vmem %s0, %s241
      %s243 = smul.u32 8, %s18
      %s244 = smul.u32 8, %s18
      %p245 = scmp.lt.s32.totalorder %s244, 15
      %s246 = scalar_select %p245, %s244, 15
      %s247 = smul.addr %s246, 4
      %s248 = scalar_lea.vmem %s4, %s247
      %s249 = smul.u32 8, %s18
      %v251 = vld [vmem:[%s242] sm:$0xf]
      %v252 = vld [vmem:[%s242 + $0x4] sm:$0xf]
      %v253 = vld [vmem:[%s242 + $0x8] sm:$0xf]
      %v254 = vld [vmem:[%s242 + $0xc] sm:$0xf]
      %v255 = vld [vmem:[%s242 + $0x10] sm:$0xf]
      %v256 = vld [vmem:[%s242 + $0x14] sm:$0xf]
      %v257 = vld [vmem:[%s242 + $0x18] sm:$0xf]
      %v258 = vld [vmem:[%s242 + $0x1c] sm:$0xf]
      %v259 = vunpack.c.l.bf16 %v251
      %v260 = vunpack.c.l.bf16 %v252
      %v261 = vunpack.c.l.bf16 %v253
      %v262 = vunpack.c.l.bf16 %v254
      %v263 = vunpack.c.l.bf16 %v255
      %v264 = vunpack.c.l.bf16 %v256
      %v265 = vunpack.c.l.bf16 %v257
      %v266 = vunpack.c.l.bf16 %v258
      %vm267 = vcmp.ge.f32.partialorder %v259, 0.0
      %vm268 = vcmp.ge.f32.partialorder %v260, 0.0
      %vm269 = vcmp.ge.f32.partialorder %v261, 0.0
      %vm270 = vcmp.ge.f32.partialorder %v262, 0.0
      %vm271 = vcmp.ge.f32.partialorder %v263, 0.0
      %vm272 = vcmp.ge.f32.partialorder %v264, 0.0
      %vm273 = vcmp.ge.f32.partialorder %v265, 0.0
      %vm274 = vcmp.ge.f32.partialorder %v266, 0.0
      %v275 = vmul.f32 %v259, 0.2
      %v276 = vmul.f32 %v260, 0.2
      %v277 = vmul.f32 %v261, 0.2
      %v278 = vmul.f32 %v262, 0.2
      %v279 = vmul.f32 %v263, 0.2
      %v280 = vmul.f32 %v264, 0.2
      %v281 = vmul.f32 %v265, 0.2
      %v282 = vmul.f32 %v266, 0.2
      %v283 = vsel %vm267, %v259, %v275
      %v284 = vsel %vm268, %v260, %v276
      %v285 = vsel %vm269, %v261, %v277
      %v286 = vsel %vm270, %v262, %v278
      %v287 = vsel %vm271, %v263, %v279
      %v288 = vsel %vm272, %v264, %v280
      %v289 = vsel %vm273, %v265, %v281
      %v290 = vsel %vm274, %v266, %v282
      %v291 = vpack.c.bf16 %v284, %v283
      %v292 = vpack.c.bf16 %v286, %v285
      %v293 = vpack.c.bf16 %v288, %v287
      %v294 = vpack.c.bf16 %v290, %v289
      %v295 = vld [vmem:[%s1] sm:$0xf]
      %v296 = vld [vmem:[%s1 + $0x4] sm:$0xf]
      %v297 = vld [vmem:[%s1 + $0x8] sm:$0xf]
      %v298 = vld [vmem:[%s1 + $0xc] sm:$0xf]
      %v299 = vld [vmem:[%s1 + $0x10] sm:$0xf]
      %v300 = vld [vmem:[%s1 + $0x14] sm:$0xf]
      %v301 = vld [vmem:[%s1 + $0x18] sm:$0xf]
      %v302 = vld [vmem:[%s1 + $0x1c] sm:$0xf]
      %v303 = vld [vmem:[%s1 + $0x20] sm:$0xf]
      %v304 = vld [vmem:[%s1 + $0x24] sm:$0xf]
      %v305 = vld [vmem:[%s1 + $0x28] sm:$0xf]
      %v306 = vld [vmem:[%s1 + $0x2c] sm:$0xf]
      %v307 = vld [vmem:[%s1 + $0x30] sm:$0xf]
      %v308 = vld [vmem:[%s1 + $0x34] sm:$0xf]
      %v309 = vld [vmem:[%s1 + $0x38] sm:$0xf]
      %v310 = vld [vmem:[%s1 + $0x3c] sm:$0xf]
      %v327 = vunpack.c.l.b16 %v295
      %v328 = vunpack.c.l.b16 %v296
      %v329 = vunpack.c.l.b16 %v297
      %v330 = vunpack.c.l.b16 %v298
      %v331 = vunpack.c.l.b16 %v299
      %v332 = vunpack.c.l.b16 %v300
      %v333 = vunpack.c.l.b16 %v301
      %v334 = vunpack.c.l.b16 %v302
      %v335 = vunpack.c.l.b16 %v303
      %v336 = vunpack.c.l.b16 %v304
      %v337 = vunpack.c.l.b16 %v305
      %v338 = vunpack.c.l.b16 %v306
      %v339 = vunpack.c.l.b16 %v307
      %v340 = vunpack.c.l.b16 %v308
      %v341 = vunpack.c.l.b16 %v309
      %v342 = vunpack.c.l.b16 %v310
      %v343 = vpack.c.b16 %v328, %v327
      %v344 = vpack.c.b16 %v330, %v329
      %v345 = vpack.c.b16 %v332, %v331
      %v346 = vpack.c.b16 %v334, %v333
      %v347 = vpack.c.b16 %v336, %v335
      %v348 = vpack.c.b16 %v338, %v337
      %v349 = vpack.c.b16 %v340, %v339
      %v350 = vpack.c.b16 %v342, %v341
      %359 = vmatprep.subr.bf16.mxu0 0
      %360 = vmatpush1.bf16.msra.mxu0 %v343
      %361 = vmatprep.subr.bf16.mxu0 0
      %362 = vmatpush1.bf16.msra.mxu0 %v344
      %363 = vmatprep.subr.bf16.mxu0 0
      %364 = vmatpush1.bf16.msra.mxu0 %v345
      %365 = vmatprep.subr.bf16.mxu0 0
      %366 = vmatpush1.bf16.msra.mxu0 %v346
      %367 = vmatprep.subr.bf16.mxu0 0
      %368 = vmatpush1.bf16.msra.mxu0 %v347
      %369 = vmatprep.subr.bf16.mxu0 0
      %370 = vmatpush1.bf16.msra.mxu0 %v348
      %371 = vmatprep.subr.bf16.mxu0 0
      %372 = vmatpush1.bf16.msra.mxu0 %v349
      %373 = vmatprep.subr.bf16.mxu0 0
      %374 = vmatpush1.bf16.msra.mxu0 %v350
      %375 = vmatprep.subr.bf16.mxu0 0
      %376 = vmatpush1.bf16.msra.mxu0 0
      %377 = vmatprep.subr.bf16.mxu0 0
      %378 = vmatpush1.bf16.msra.mxu0 0
      %379 = vmatprep.subr.bf16.mxu0 0
      %380 = vmatpush1.bf16.msra.mxu0 0
      %381 = vmatprep.subr.bf16.mxu0 0
      %382 = vmatpush1.bf16.msra.mxu0 0
      %383 = vmatprep.subr.bf16.mxu0 0
      %384 = vmatpush1.bf16.msra.mxu0 0
      %385 = vmatprep.subr.bf16.mxu0 0
      %386 = vmatpush1.bf16.msra.mxu0 0
      %387 = vmatprep.subr.bf16.mxu0 0
      %388 = vmatpush1.bf16.msra.mxu0 0
      %389 = vmatprep.subr.bf16.mxu0 0
      %390 = vmatpush1.bf16.msra.mxu0 0
      %391 = vmatprep.mubr.bf16.mxu0 0
      %392 = vmatmul.mubr.bf16.gmra.mrb[0].mxu0 %v291
      %v393 = vpop.f32.mrb[0].mxu0
      %v394 = vadd.f32 0.0, %v393
      %v395 = vpop.f32.mrb[0].mxu0
      %v396 = vpop.f32.mrb[0].mxu0
      %v397 = vadd.f32 0.0, %v396
      %v398 = vpop.f32.mrb[0].mxu0
      %399 = vmatprep.mubr.bf16.mxu0 0
      %400 = vmatmul.mubr.bf16.gmra.mrb[0].mxu0 %v292
      %v401 = vpop.f32.mrb[0].mxu0
      %v402 = vadd.f32 0.0, %v401
      %v403 = vpop.f32.mrb[0].mxu0
      %v404 = vpop.f32.mrb[0].mxu0
      %v405 = vadd.f32 0.0, %v404
      %v406 = vpop.f32.mrb[0].mxu0
      %407 = vmatprep.mubr.bf16.mxu0 0
      %408 = vmatmul.mubr.bf16.gmra.mrb[0].mxu0 %v293
      %v409 = vpop.f32.mrb[0].mxu0
      %v410 = vadd.f32 0.0, %v409
      %v411 = vpop.f32.mrb[0].mxu0
      %v412 = vpop.f32.mrb[0].mxu0
      %v413 = vadd.f32 0.0, %v412
      %v414 = vpop.f32.mrb[0].mxu0
      %415 = vmatprep.mubr.bf16.mxu0 0
      %416 = vmatmul.mubr.bf16.gmra.mrb[0].mxu0 %v294
      %v417 = vpop.f32.mrb[0].mxu0
      %v418 = vadd.f32 0.0, %v417
      %v419 = vpop.f32.mrb[0].mxu0
      %v420 = vpop.f32.mrb[0].mxu0
      %v421 = vadd.f32 0.0, %v420
      %v422 = vpop.f32.mrb[0].mxu0
      %423 = vdwg.mxu0
      %v424 = vpack.c.bf16 %v397, %v394
      %v425 = vpack.c.bf16 %v405, %v402
      %v426 = vpack.c.bf16 %v413, %v410
      %v427 = vpack.c.bf16 %v421, %v418
      %v432 = vunpack.c.l.b16 %v424
      %v433 = vunpack.c.h.b16 %v424
      %v434 = vunpack.c.l.b16 %v425
      %v435 = vunpack.c.h.b16 %v425
      %v436 = vunpack.c.l.b16 %v426
      %v437 = vunpack.c.h.b16 %v426
      %v438 = vunpack.c.l.b16 %v427
      %v439 = vunpack.c.h.b16 %v427
      %v440 = vpack.c.b16 %v432, %v432
      %v441 = vpack.c.b16 %v433, %v433
      %v442 = vpack.c.b16 %v434, %v434
      %v443 = vpack.c.b16 %v435, %v435
      %v444 = vpack.c.b16 %v436, %v436
      %v445 = vpack.c.b16 %v437, %v437
      %v446 = vpack.c.b16 %v438, %v438
      %v447 = vpack.c.b16 %v439, %v439
      %vm456 = vcmask 125952
      %457 = vst.msk [vmem:[%s248] sm:$0xf] %vm456, %v440
      %458 = vst.msk [vmem:[%s248 + $0x4] sm:$0xf] %vm456, %v441
      %459 = vst.msk [vmem:[%s248 + $0x8] sm:$0xf] %vm456, %v442
      %460 = vst.msk [vmem:[%s248 + $0xc] sm:$0xf] %vm456, %v443
      %461 = vst.msk [vmem:[%s248 + $0x10] sm:$0xf] %vm456, %v444
      %462 = vst.msk [vmem:[%s248 + $0x14] sm:$0xf] %vm456, %v445
      %463 = vst.msk [vmem:[%s248 + $0x18] sm:$0xf] %vm456, %v446
      %464 = vst.msk [vmem:[%s248 + $0x1c] sm:$0xf] %vm456, %v447
      %p465 = scmp.eq.s32.totalorder %s18, 0
      // Predicated region
      $region37: #{discriminator_forward_pallas.6} parent=35 // pred_check
        %p466 = pneg %p465
      $region38: #{discriminator_forward_pallas.6} parent=35 // pred_check_branch
        %468 = sbr.rel (%p466) target = $region40
      $region39: #{discriminator_forward_pallas.6} parent=35 // pred_region
        %vm469 = vcmask 122880
        %470 = vst.msk [vmem:[%s5] sm:$0x1] %vm469, 0.0
        %471 = vst.msk [vmem:[%s6] sm:$0x1] %vm469, 0.0
      $region40: #{discriminator_forward_pallas.6} parent=35 // pred_fallthru
        _
      %v472 = vld [vmem:[%s5] sm:$0x1]
      %vm473 = vcmask 130048
      %v474 = vsel %vm473, %v394, 0.0
      %v475 = vsel %vm473, %v397, 0.0
      %v476 = vadd.f32 %v474, %v475
      %v477 = vsel %vm473, %v402, 0.0
      %v478 = vadd.f32 %v476, %v477
      %v479 = vsel %vm473, %v405, 0.0
      %v480 = vadd.f32 %v478, %v479
      %v481 = vsel %vm473, %v410, 0.0
      %v482 = vadd.f32 %v480, %v481
      %v483 = vsel %vm473, %v413, 0.0
      %v484 = vadd.f32 %v482, %v483
      %v485 = vsel %vm473, %v418, 0.0
      %v486 = vadd.f32 %v484, %v485
      %v487 = vsel %vm473, %v421, 0.0
      %v488 = vadd.f32 %v486, %v487
      %v489 = vrot.slane %v488, 4
      %v490 = vadd.f32 %v488, %v489
      %v491 = vrot.slane %v490, 2
      %v492 = vadd.f32 %v490, %v491
      %v493 = vrot.slane %v492, 1
      %v494 = vadd.f32 %v492, %v493
      %v495 = vadd.f32 %v472, %v494
      %vm496 = vcmask 122880
      %497 = vst.msk [vmem:[%s5] sm:$0x1] %vm496, %v495
      %v498 = vld [vmem:[%s6] sm:$0x1]
      %v499 = vmul.f32 %v394, %v394
      %v500 = vmul.f32 %v397, %v397
      %v501 = vmul.f32 %v402, %v402
      %v502 = vmul.f32 %v405, %v405
      %v503 = vmul.f32 %v410, %v410
      %v504 = vmul.f32 %v413, %v413
      %v505 = vmul.f32 %v418, %v418
      %v506 = vmul.f32 %v421, %v421
      %v507 = vsel %vm473, %v499, 0.0
      %v508 = vsel %vm473, %v500, 0.0
      %v509 = vadd.f32 %v507, %v508
      %v510 = vsel %vm473, %v501, 0.0
      %v511 = vadd.f32 %v509, %v510
      %v512 = vsel %vm473, %v502, 0.0
      %v513 = vadd.f32 %v511, %v512
      %v514 = vsel %vm473, %v503, 0.0
      %v515 = vadd.f32 %v513, %v514
      %v516 = vsel %vm473, %v504, 0.0
      %v517 = vadd.f32 %v515, %v516
      %v518 = vsel %vm473, %v505, 0.0
      %v519 = vadd.f32 %v517, %v518
      %v520 = vsel %vm473, %v506, 0.0
      %v521 = vadd.f32 %v519, %v520
      %v522 = vrot.slane %v521, 4
      %v523 = vadd.f32 %v521, %v522
      %v524 = vrot.slane %v523, 2
      %v525 = vadd.f32 %v523, %v524
      %v526 = vrot.slane %v525, 1
      %v527 = vadd.f32 %v525, %v526
      %v528 = vadd.f32 %v498, %v527
      %529 = vst.msk [vmem:[%s6] sm:$0x1] %vm496, %v528
      %s530 = smul.u32 8, %s18
      %p531 = scmp.lt.s32.totalorder %s530, 15
      %s532 = scalar_select %p531, %s530, 15
      %s533 = smul.addr %s532, 4
      %s534 = scalar_lea.vmem %s4, %s533
      // Predicated region
      $region41: #{discriminator_forward_pallas.6} parent=35 // pred_check
        %p535 = pneg %p125
      $region42: #{discriminator_forward_pallas.6} parent=35 // pred_check_branch
        %537 = sbr.rel (%p535) target = $region44
      $region43: #{discriminator_forward_pallas.6} parent=35 // pred_region
        %s538 = smul.u32 8, %s18
      $region44: #{discriminator_forward_pallas.6} parent=35 // pred_fallthru
        _
      // Predicated region
      $region45: #{discriminator_forward_pallas.6} parent=35 // pred_check
        %p539 = pneg %p146
      $region46: #{discriminator_forward_pallas.6} parent=35 // pred_check_branch
        %541 = sbr.rel (%p539) target = $region48
      $region47: #{discriminator_forward_pallas.6} parent=35 // pred_region
        _
      $region48: #{discriminator_forward_pallas.6} parent=35 // pred_fallthru
        _
      // Predicated region
      $region49: #{discriminator_forward_pallas.6} parent=35 // pred_check
        %p542 = pneg %p167
      $region50: #{discriminator_forward_pallas.6} parent=35 // pred_check_branch
        %544 = sbr.rel (%p542) target = $region52
      $region51: #{discriminator_forward_pallas.6} parent=35 // pred_region
        _
      $region52: #{discriminator_forward_pallas.6} parent=35 // pred_fallthru
        _
      // Predicated region
      $region53: #{discriminator_forward_pallas.6} parent=35 // pred_check
        %p545 = pneg %p146
      $region54: #{discriminator_forward_pallas.6} parent=35 // pred_check_branch
        %547 = sbr.rel (%p545) target = $region56
      $region55: #{discriminator_forward_pallas.6} parent=35 // pred_region
        _
      $region56: #{discriminator_forward_pallas.6} parent=35 // pred_fallthru
        _
      // Predicated region
      $region57: #{discriminator_forward_pallas.6} parent=35 // pred_check
        %p548 = pneg %p167
      $region58: #{discriminator_forward_pallas.6} parent=35 // pred_check_branch
        %550 = sbr.rel (%p548) target = $region60
      $region59: #{discriminator_forward_pallas.6} parent=35 // pred_region
        _
      $region60: #{discriminator_forward_pallas.6} parent=35 // pred_fallthru
        _
    $region36: #{discriminator_forward_pallas.6} parent=5 // pred_fallthru
      _
    %p551 = scmp.le.s32.totalorder 2, %s13
    // Predicated region
    $region61: #{discriminator_forward_pallas.6} parent=5 // pred_check
      %p552 = pneg %p551
    $region62: #{discriminator_forward_pallas.6} parent=5 // pred_check_branch
      %554 = sbr.rel (%p552) target = $region64
    $region63: #{discriminator_forward_pallas.6} parent=5 // pred_region
      %s555 = ssub.s32 %s13, 2
      // Predicated region
      $region65: #{discriminator_forward_pallas.6} parent=63 // pred_check
        %p556 = pneg %p131
      $region66: #{discriminator_forward_pallas.6} parent=63 // pred_check_branch
        %558 = sbr.rel (%p556) target = $region68
      $region67: #{discriminator_forward_pallas.6} parent=63 // pred_region
        %s559 = smul.u32 8, %s19
        %p560 = scmp.lt.s32.totalorder %s559, 15
        %s561 = scalar_select %p560, %s559, 15
        %s562 = smul.addr %s561, 4
        %s563 = scalar_lea.vmem %s4, %s562
      $region68: #{discriminator_forward_pallas.6} parent=63 // pred_fallthru
        _
    $region64: #{discriminator_forward_pallas.6} parent=5 // pred_fallthru
      _
  $region6: #{discriminator_forward_pallas.6} parent=0 // loop_footer
    %s17 = sadd.s32 1, %s13
  $region7: #{discriminator_forward_pallas.6} parent=0 // loop_footer_branch
    %12 = sbr.rel target = $region3
  $region8: #{discriminator_forward_pallas.6} parent=0 // loop_exit
    _

// kernel: discriminator_forward_pallas.7
$region0: #{discriminator_forward_pallas.7}
  #allocation0 [shape = 'u32[]', space=smem, size = 0x4, offset = 0x4, fixed_abs, tag = 'smem constant byte address 0x4 - core index']
  #allocation1 [shape = 'u32[144,128]{1,0:T(1,128)}', space=vmem, size = 0x12000, scoped, tag = 'internal scratch']
  %s0 = inlined_call_operand.vmem [shape: bf16[32,256], index: 0, kind: input, shape index: {}]
  %s1 = inlined_call_operand.vmem [shape: bf16[256,32], index: 1, kind: input, shape index: {}]
  %s2 = inlined_call_operand.vmem [shape: f32[1,256], index: 2, kind: input, shape index: {}]
  %s3 = inlined_call_operand.vmem [shape: f32[1,256], index: 3, kind: input, shape index: {}]
  %s4 = inlined_call_operand.vmem [shape: bf16[32,32], index: 4, kind: output, shape index: {0}]
  %s5 = inlined_call_operand.vmem [shape: f32[1,32], index: 5, kind: output, shape index: {1}]
  %s6 = inlined_call_operand.vmem [shape: f32[1,32], index: 6, kind: output, shape index: {2}]
  %7 = xla_tuple %s4, %s5, %s6
  %s8 = sld [smem:[#allocation0]]
  $region46: #{discriminator_forward_pallas.7} parent=0
    _
  %s10 = ssub.s32 1, %s8
  %s11 = scalar_select 0, %s10, %s8
  // Predicated region
  $region2: #{discriminator_forward_pallas.7} parent=0 // pred_check
    _
  $region3: #{discriminator_forward_pallas.7} parent=0 // pred_check_branch
    %13 = sbr.rel (0) target = $region5
  $region4: #{discriminator_forward_pallas.7} parent=0 // pred_region
    _
  $region5: #{discriminator_forward_pallas.7} parent=0 // pred_fallthru
    _
  // Predicated region
  $region6: #{discriminator_forward_pallas.7} parent=0 // pred_check
    _
  $region7: #{discriminator_forward_pallas.7} parent=0 // pred_check_branch
    %15 = sbr.rel (0) target = $region9
  $region8: #{discriminator_forward_pallas.7} parent=0 // pred_region
    _
  $region9: #{discriminator_forward_pallas.7} parent=0 // pred_fallthru
    _
  // Predicated region
  $region10: #{discriminator_forward_pallas.7} parent=0 // pred_check
    _
  $region11: #{discriminator_forward_pallas.7} parent=0 // pred_check_branch
    %17 = sbr.rel (0) target = $region13
  $region12: #{discriminator_forward_pallas.7} parent=0 // pred_region
    _
  $region13: #{discriminator_forward_pallas.7} parent=0 // pred_fallthru
    _
  // Predicated region
  $region14: #{discriminator_forward_pallas.7} parent=0 // pred_check
    _
  $region15: #{discriminator_forward_pallas.7} parent=0 // pred_check_branch
    %19 = sbr.rel (0) target = $region17
  $region16: #{discriminator_forward_pallas.7} parent=0 // pred_region
    _
  $region17: #{discriminator_forward_pallas.7} parent=0 // pred_fallthru
    _
  %v21 = vld [vmem:[%s0] sm:$0xff]
  %v22 = vld [vmem:[%s0 + $0x8] sm:$0xff]
  %v23 = vld [vmem:[%s0 + $0x10] sm:$0xff]
  %v24 = vld [vmem:[%s0 + $0x18] sm:$0xff]
  %v25 = vld [vmem:[%s1] sm:$0xf]
  %v26 = vld [vmem:[%s1 + $0x4] sm:$0xf]
  %v27 = vld [vmem:[%s1 + $0x8] sm:$0xf]
  %v28 = vld [vmem:[%s1 + $0xc] sm:$0xf]
  %v29 = vld [vmem:[%s1 + $0x10] sm:$0xf]
  %v30 = vld [vmem:[%s1 + $0x14] sm:$0xf]
  %v31 = vld [vmem:[%s1 + $0x18] sm:$0xf]
  %v32 = vld [vmem:[%s1 + $0x1c] sm:$0xf]
  %v33 = vld [vmem:[%s1 + $0x20] sm:$0xf]
  %v34 = vld [vmem:[%s1 + $0x24] sm:$0xf]
  %v35 = vld [vmem:[%s1 + $0x28] sm:$0xf]
  %v36 = vld [vmem:[%s1 + $0x2c] sm:$0xf]
  %v37 = vld [vmem:[%s1 + $0x30] sm:$0xf]
  %v38 = vld [vmem:[%s1 + $0x34] sm:$0xf]
  %v39 = vld [vmem:[%s1 + $0x38] sm:$0xf]
  %v40 = vld [vmem:[%s1 + $0x3c] sm:$0xf]
  %v41 = vld [vmem:[%s1 + $0x40] sm:$0xf]
  %v42 = vld [vmem:[%s1 + $0x44] sm:$0xf]
  %v43 = vld [vmem:[%s1 + $0x48] sm:$0xf]
  %v44 = vld [vmem:[%s1 + $0x4c] sm:$0xf]
  %v45 = vld [vmem:[%s1 + $0x50] sm:$0xf]
  %v46 = vld [vmem:[%s1 + $0x54] sm:$0xf]
  %v47 = vld [vmem:[%s1 + $0x58] sm:$0xf]
  %v48 = vld [vmem:[%s1 + $0x5c] sm:$0xf]
  %v49 = vld [vmem:[%s1 + $0x60] sm:$0xf]
  %v50 = vld [vmem:[%s1 + $0x64] sm:$0xf]
  %v51 = vld [vmem:[%s1 + $0x68] sm:$0xf]
  %v52 = vld [vmem:[%s1 + $0x6c] sm:$0xf]
  %v53 = vld [vmem:[%s1 + $0x70] sm:$0xf]
  %v54 = vld [vmem:[%s1 + $0x74] sm:$0xf]
  %v55 = vld [vmem:[%s1 + $0x78] sm:$0xf]
  %v56 = vld [vmem:[%s1 + $0x7c] sm:$0xf]
  %v61 = vunpack.c.l.b16 %v21
  %v62 = vunpack.c.h.b16 %v21
  %v63 = vunpack.c.l.b16 %v22
  %v64 = vunpack.c.h.b16 %v22
  %v65 = vunpack.c.l.b16 %v23
  %v66 = vunpack.c.h.b16 %v23
  %v67 = vunpack.c.l.b16 %v24
  %v68 = vunpack.c.h.b16 %v24
  %v69 = vpack.c.b16 %v63, %v61
  %v70 = vpack.c.b16 %v64, %v62
  %v71 = vpack.c.b16 %v67, %v65
  %v72 = vpack.c.b16 %v68, %v66
  %v109 = vunpack.c.l.b16 %v25
  %v110 = vunpack.c.l.b16 %v26
  %v111 = vunpack.c.l.b16 %v27
  %v112 = vunpack.c.l.b16 %v28
  %v113 = vunpack.c.l.b16 %v29
  %v114 = vunpack.c.l.b16 %v30
  %v115 = vunpack.c.l.b16 %v31
  %v116 = vunpack.c.l.b16 %v32
  %v117 = vunpack.c.l.b16 %v33
  %v118 = vunpack.c.l.b16 %v34
  %v119 = vunpack.c.l.b16 %v35
  %v120 = vunpack.c.l.b16 %v36
  %v121 = vunpack.c.l.b16 %v37
  %v122 = vunpack.c.l.b16 %v38
  %v123 = vunpack.c.l.b16 %v39
  %v124 = vunpack.c.l.b16 %v40
  %v125 = vunpack.c.l.b16 %v41
  %v126 = vunpack.c.l.b16 %v42
  %v127 = vunpack.c.l.b16 %v43
  %v128 = vunpack.c.l.b16 %v44
  %v129 = vunpack.c.l.b16 %v45
  %v130 = vunpack.c.l.b16 %v46
  %v131 = vunpack.c.l.b16 %v47
  %v132 = vunpack.c.l.b16 %v48
  %v133 = vunpack.c.l.b16 %v49
  %v134 = vunpack.c.l.b16 %v50
  %v135 = vunpack.c.l.b16 %v51
  %v136 = vunpack.c.l.b16 %v52
  %v137 = vunpack.c.l.b16 %v53
  %v138 = vunpack.c.l.b16 %v54
  %v139 = vunpack.c.l.b16 %v55
  %v140 = vunpack.c.l.b16 %v56
  %v141 = vpack.c.b16 %v110, %v109
  %v142 = vpack.c.b16 %v112, %v111
  %v143 = vpack.c.b16 %v114, %v113
  %v144 = vpack.c.b16 %v116, %v115
  %v145 = vpack.c.b16 %v118, %v117
  %v146 = vpack.c.b16 %v120, %v119
  %v147 = vpack.c.b16 %v122, %v121
  %v148 = vpack.c.b16 %v124, %v123
  %v149 = vpack.c.b16 %v126, %v125
  %v150 = vpack.c.b16 %v128, %v127
  %v151 = vpack.c.b16 %v130, %v129
  %v152 = vpack.c.b16 %v132, %v131
  %v153 = vpack.c.b16 %v134, %v133
  %v154 = vpack.c.b16 %v136, %v135
  %v155 = vpack.c.b16 %v138, %v137
  %v156 = vpack.c.b16 %v140, %v139
  %173 = vmatprep.subr.bf16.mxu0 0
  %174 = vmatpush1.bf16.msra.mxu0 %v141
  %175 = vmatprep.subr.bf16.mxu0 0
  %176 = vmatpush1.bf16.msra.mxu0 %v142
  %177 = vmatprep.subr.bf16.mxu0 0
  %178 = vmatpush1.bf16.msra.mxu0 %v143
  %179 = vmatprep.subr.bf16.mxu0 0
  %180 = vmatpush1.bf16.msra.mxu0 %v144
  %181 = vmatprep.subr.bf16.mxu0 0
  %182 = vmatpush1.bf16.msra.mxu0 %v145
  %183 = vmatprep.subr.bf16.mxu0 0
  %184 = vmatpush1.bf16.msra.mxu0 %v146
  %185 = vmatprep.subr.bf16.mxu0 0
  %186 = vmatpush1.bf16.msra.mxu0 %v147
  %187 = vmatprep.subr.bf16.mxu0 0
  %188 = vmatpush1.bf16.msra.mxu0 %v148
  %189 = vmatprep.subr.bf16.mxu0 0
  %190 = vmatpush1.bf16.msra.mxu0 %v149
  %191 = vmatprep.subr.bf16.mxu0 0
  %192 = vmatpush1.bf16.msra.mxu0 %v150
  %193 = vmatprep.subr.bf16.mxu0 0
  %194 = vmatpush1.bf16.msra.mxu0 %v151
  %195 = vmatprep.subr.bf16.mxu0 0
  %196 = vmatpush1.bf16.msra.mxu0 %v152
  %197 = vmatprep.subr.bf16.mxu0 0
  %198 = vmatpush1.bf16.msra.mxu0 %v153
  %199 = vmatprep.subr.bf16.mxu0 0
  %200 = vmatpush1.bf16.msra.mxu0 %v154
  %201 = vmatprep.subr.bf16.mxu0 0
  %202 = vmatpush1.bf16.msra.mxu0 %v155
  %203 = vmatprep.subr.bf16.mxu0 0
  %204 = vmatpush1.bf16.msra.mxu0 %v156
  %205 = vmatprep.mubr.bf16.mxu0 %v70
  %206 = vmatmul.mubr.bf16.gmra.mrb[0].mxu0 %v69
  %v207 = vpop.f32.mrb[0].mxu0
  %v208 = vadd.f32 0.0, %v207
  %v209 = vpop.f32.mrb[0].mxu0
  %v210 = vpop.f32.mrb[0].mxu0
  %v211 = vadd.f32 0.0, %v210
  %v212 = vpop.f32.mrb[0].mxu0
  %213 = vmatprep.mubr.bf16.mxu0 %v72
  %214 = vmatmul.mubr.bf16.gmra.mrb[0].mxu0 %v71
  %v215 = vpop.f32.mrb[0].mxu0
  %v216 = vadd.f32 0.0, %v215
  %v217 = vpop.f32.mrb[0].mxu0
  %v218 = vpop.f32.mrb[0].mxu0
  %v219 = vadd.f32 0.0, %v218
  %v220 = vpop.f32.mrb[0].mxu0
  %221 = vdwg.mxu0
  %v222 = vpack.c.bf16 %v211, %v208
  %v223 = vpack.c.bf16 %v219, %v216
  %v226 = vunpack.c.l.b16 %v222
  %v227 = vunpack.c.h.b16 %v222
  %v228 = vunpack.c.l.b16 %v223
  %v229 = vunpack.c.h.b16 %v223
  %v230 = vpack.c.b16 %v226, %v226
  %v231 = vpack.c.b16 %v227, %v227
  %v232 = vpack.c.b16 %v228, %v228
  %v233 = vpack.c.b16 %v229, %v229
  %vm238 = vcmask 257024
  %239 = vst.msk [vmem:[%s4] sm:$0xf] %vm238, %v230
  %240 = vst.msk [vmem:[%s4 + $0x4] sm:$0xf] %vm238, %v231
  %241 = vst.msk [vmem:[%s4 + $0x8] sm:$0xf] %vm238, %v232
  %242 = vst.msk [vmem:[%s4 + $0xc] sm:$0xf] %vm238, %v233
  %p243 = scmp.eq.s32.totalorder 0, 0
  // Predicated region
  $region18: #{discriminator_forward_pallas.7} parent=0 // pred_check
    %p244 = pneg %p243
  $region19: #{discriminator_forward_pallas.7} parent=0 // pred_check_branch
    %246 = sbr.rel (%p244) target = $region21
  $region20: #{discriminator_forward_pallas.7} parent=0 // pred_region
    %vm247 = vcmask 253952
    %248 = vst.msk [vmem:[%s5] sm:$0x1] %vm247, 0.0
    %249 = vst.msk [vmem:[%s6] sm:$0x1] %vm247, 0.0
  $region21: #{discriminator_forward_pallas.7} parent=0 // pred_fallthru
    _
  %v250 = vld [vmem:[%s5] sm:$0x1]
  %vm251 = vcmask 261120
  %v252 = vsel %vm251, %v208, 0.0
  %v253 = vsel %vm251, %v211, 0.0
  %v254 = vadd.f32 %v252, %v253
  %v255 = vsel %vm251, %v216, 0.0
  %v256 = vadd.f32 %v254, %v255
  %v257 = vsel %vm251, %v219, 0.0
  %v258 = vadd.f32 %v256, %v257
  %v259 = vrot.slane %v258, 4
  %v260 = vadd.f32 %v258, %v259
  %v261 = vrot.slane %v260, 2
  %v262 = vadd.f32 %v260, %v261
  %v263 = vrot.slane %v262, 1
  %v264 = vadd.f32 %v262, %v263
  %v265 = vadd.f32 %v250, %v264
  %vm266 = vcmask 253952
  %267 = vst.msk [vmem:[%s5] sm:$0x1] %vm266, %v265
  %v268 = vld [vmem:[%s6] sm:$0x1]
  %v269 = vmul.f32 %v208, %v208
  %v270 = vmul.f32 %v211, %v211
  %v271 = vmul.f32 %v216, %v216
  %v272 = vmul.f32 %v219, %v219
  %v273 = vsel %vm251, %v269, 0.0
  %v274 = vsel %vm251, %v270, 0.0
  %v275 = vadd.f32 %v273, %v274
  %v276 = vsel %vm251, %v271, 0.0
  %v277 = vadd.f32 %v275, %v276
  %v278 = vsel %vm251, %v272, 0.0
  %v279 = vadd.f32 %v277, %v278
  %v280 = vrot.slane %v279, 4
  %v281 = vadd.f32 %v279, %v280
  %v282 = vrot.slane %v281, 2
  %v283 = vadd.f32 %v281, %v282
  %v284 = vrot.slane %v283, 1
  %v285 = vadd.f32 %v283, %v284
  %v286 = vadd.f32 %v268, %v285
  %287 = vst.msk [vmem:[%s6] sm:$0x1] %vm266, %v286
  // Predicated region
  $region22: #{discriminator_forward_pallas.7} parent=0 // pred_check
    _
  $region23: #{discriminator_forward_pallas.7} parent=0 // pred_check_branch
    %289 = sbr.rel (0) target = $region25
  $region24: #{discriminator_forward_pallas.7} parent=0 // pred_region
    _
  $region25: #{discriminator_forward_pallas.7} parent=0 // pred_fallthru
    _
  // Predicated region
  $region26: #{discriminator_forward_pallas.7} parent=0 // pred_check
    _
  $region27: #{discriminator_forward_pallas.7} parent=0 // pred_check_branch
    %291 = sbr.rel (0) target = $region29
  $region28: #{discriminator_forward_pallas.7} parent=0 // pred_region
    _
  $region29: #{discriminator_forward_pallas.7} parent=0 // pred_fallthru
    _
  // Predicated region
  $region30: #{discriminator_forward_pallas.7} parent=0 // pred_check
    _
  $region31: #{discriminator_forward_pallas.7} parent=0 // pred_check_branch
    %293 = sbr.rel (0) target = $region33
  $region32: #{discriminator_forward_pallas.7} parent=0 // pred_region
    _
  $region33: #{discriminator_forward_pallas.7} parent=0 // pred_fallthru
    _
  // Predicated region
  $region34: #{discriminator_forward_pallas.7} parent=0 // pred_check
    _
  $region35: #{discriminator_forward_pallas.7} parent=0 // pred_check_branch
    %295 = sbr.rel (0) target = $region37
  $region36: #{discriminator_forward_pallas.7} parent=0 // pred_region
    _
  $region37: #{discriminator_forward_pallas.7} parent=0 // pred_fallthru
    _
  // Predicated region
  $region38: #{discriminator_forward_pallas.7} parent=0 // pred_check
    _
  $region39: #{discriminator_forward_pallas.7} parent=0 // pred_check_branch
    %297 = sbr.rel (0) target = $region41
  $region40: #{discriminator_forward_pallas.7} parent=0 // pred_region
    _
  $region41: #{discriminator_forward_pallas.7} parent=0 // pred_fallthru
    _
  // Predicated region
  $region42: #{discriminator_forward_pallas.7} parent=0 // pred_check
    _
  $region43: #{discriminator_forward_pallas.7} parent=0 // pred_check_branch
    %299 = sbr.rel (0) target = $region45
  $region44: #{discriminator_forward_pallas.7} parent=0 // pred_region
    _
  $region45: #{discriminator_forward_pallas.7} parent=0 // pred_fallthru
    _

// kernel: tile.13
$region0: #{tile.13}
  #allocation0 [shape = 's32[1]{0}', space=sflag, size = 0x4, scoped, tag = 'scoped memory for tile.13']
  %s0 = inlined_call_operand.vmem [shape: f32[64], index: 0, kind: input, shape index: {}]
  %s1 = inlined_call_operand.vmem [shape: f32[4,64], index: 1, kind: output, shape index: {}]
  // Predicated region
  $region2: #{tile.13} parent=0 // pred_check
    _
  $region3: #{tile.13} parent=0 // pred_check_branch
    %3 = sbr.rel (0) target = $region5
  $region4: #{tile.13} parent=0 // pred_region
    _
  $region5: #{tile.13} parent=0 // pred_fallthru
    _
  %v4 = vld [vmem:[%s0] ss:$0 sm:$0xff]
  %5 = vst [vmem:[%s1] sm:$0xf] %v4

// kernel: tile.14
$region0: #{tile.14}
  %s0 = inlined_call_operand.vmem [shape: f32[4,64], index: 0, kind: input, shape index: {}]
  %s1 = inlined_call_operand.vmem [shape: f32[1,256], index: 1, kind: output, shape index: {}]
  $region1: #{tile.14} parent=0
    #allocation0 [shape = 'u8[8192]{0}', space=vmem, size = 0x2000, scoped, tag = 'scoped mem for output reshape']
    #allocation1 [shape = 'u8[4096]{0}', space=vmem, size = 0x1000, scoped, tag = 'scoped mem for input reshape']
    %s3 = sshllo.u32 0, 4
    %v4 = vld [vmem:[%s0] sm:%s3]
    %5 = vst [vmem:[#allocation1] sm:%s3] %v4
    %s6 = smov 3
    %v7 = vld [vmem:[#allocation1] ss:$2 sm:%s6]
    %vm8 = vcmask 523264
    %9 = vst.msk [vmem:[#allocation0] ss:$8 sm:$0x3] %vm8, %v7
    %s10 = scalar_lea.vmem [#allocation1], 1
    %s11 = smov 3
    %v12 = vld [vmem:[%s10] ss:$2 sm:%s11]
    %13 = vrot.lane.b32.xlu0 %v12, 64
    %v14 = vpop.permute.xlu0 %13
    %vm15 = vcmask 1048064
    %16 = vst.msk [vmem:[#allocation0] ss:$8 sm:$0x3] %vm15, %v14
    %s18 = sshllo.u32 0, 1
    %v20 = vld [vmem:[#allocation0] sm:%s18]
    %s21 = sshllo.u32 0, 1
    %22 = vst [vmem:[%s1] sm:%s21] %v20
    %s23 = scalar_lea.vmem [#allocation0], 8
    %v24 = vld [vmem:[%s23] sm:%s18]
    %s25 = sshllo.u32 0, 1
    %s26 = scalar_lea.vmem %s1, 1
    %27 = vst [vmem:[%s26] sm:%s25] %v24

// kernel: discriminator_forward_pallas.9
$region0: #{discriminator_forward_pallas.9}
  #allocation0 [shape = 'u32[]', space=smem, size = 0x4, offset = 0x4, fixed_abs, tag = 'smem constant byte address 0x4 - core index']
  #allocation1 [shape = 'u32[144,128]{1,0:T(1,128)}', space=vmem, size = 0x12000, scoped, tag = 'internal scratch']
  %s0 = inlined_call_operand.vmem [shape: bf16[2,256], index: 0, kind: input, shape index: {}]
  %s1 = inlined_call_operand.vmem [shape: bf16[256,1], index: 1, kind: input, shape index: {}]
  %s2 = inlined_call_operand.vmem [shape: f32[1,256], index: 2, kind: input, shape index: {}]
  %s3 = inlined_call_operand.vmem [shape: f32[1,256], index: 3, kind: input, shape index: {}]
  %s4 = inlined_call_operand.vmem [shape: f32[2,1], index: 4, kind: output, shape index: {}]
  %s5 = sld [smem:[#allocation0]]
  $region26: #{discriminator_forward_pallas.9} parent=0
    _
  %s7 = ssub.s32 1, %s5
  %s8 = scalar_select 0, %s7, %s5
  // Predicated region
  $region2: #{discriminator_forward_pallas.9} parent=0 // pred_check
    _
  $region3: #{discriminator_forward_pallas.9} parent=0 // pred_check_branch
    %10 = sbr.rel (0) target = $region5
  $region4: #{discriminator_forward_pallas.9} parent=0 // pred_region
    _
  $region5: #{discriminator_forward_pallas.9} parent=0 // pred_fallthru
    _
  // Predicated region
  $region6: #{discriminator_forward_pallas.9} parent=0 // pred_check
    _
  $region7: #{discriminator_forward_pallas.9} parent=0 // pred_check_branch
    %12 = sbr.rel (0) target = $region9
  $region8: #{discriminator_forward_pallas.9} parent=0 // pred_region
    _
  $region9: #{discriminator_forward_pallas.9} parent=0 // pred_fallthru
    _
  // Predicated region
  $region10: #{discriminator_forward_pallas.9} parent=0 // pred_check
    _
  $region11: #{discriminator_forward_pallas.9} parent=0 // pred_check_branch
    %14 = sbr.rel (0) target = $region13
  $region12: #{discriminator_forward_pallas.9} parent=0 // pred_region
    _
  $region13: #{discriminator_forward_pallas.9} parent=0 // pred_fallthru
    _
  // Predicated region
  $region14: #{discriminator_forward_pallas.9} parent=0 // pred_check
    _
  $region15: #{discriminator_forward_pallas.9} parent=0 // pred_check_branch
    %16 = sbr.rel (0) target = $region17
  $region16: #{discriminator_forward_pallas.9} parent=0 // pred_region
    _
  $region17: #{discriminator_forward_pallas.9} parent=0 // pred_fallthru
    _
  %v18 = vld [vmem:[%s0] sm:$0x3]
  %v19 = vunpack.c.l.bf16 %v18
  %v20 = vld [vmem:[%s2] sm:$0x3]
  %v22 = vlaneseq
  %v23 = vshrl.u32 %v22, 7
  %v24 = vsub.s32 0, %v23
  %v25 = vrot.slane %v20, %v24
  %v26 = vlaneseq
  %v27 = vshrl.u32 %v26, 7
  %v28 = vsub.s32 1, %v27
  %v29 = vrot.slane %v20, %v28
  %v30 = vcombine.low %v25, %v29
  %v32 = vunpack.c.l.s4 1983009808
  %v33 = vunpack.c.0.s8 %v32
  %v34 = vlaneseq
  %v35 = vshrl.u32 %v34, 7
  %v36 = vsub.s32 %v33, %v35
  %v37 = vrot.slane %v30, %v36
  %v39 = vmul.f32 %v19, %v37
  %v40 = vld [vmem:[%s3] sm:$0x3]
  %v42 = vlaneseq
  %v43 = vshrl.u32 %v42, 7
  %v44 = vsub.s32 0, %v43
  %v45 = vrot.slane %v40, %v44
  %v46 = vlaneseq
  %v47 = vshrl.u32 %v46, 7
  %v48 = vsub.s32 1, %v47
  %v49 = vrot.slane %v40, %v48
  %v50 = vcombine.low %v45, %v49
  %v52 = vunpack.c.l.s4 1983009808
  %v53 = vunpack.c.0.s8 %v52
  %v54 = vlaneseq
  %v55 = vshrl.u32 %v54, 7
  %v56 = vsub.s32 %v53, %v55
  %v57 = vrot.slane %v50, %v56
  %v59 = vadd.f32 %v39, %v57
  %vm60 = vcmp.ge.f32.partialorder %v59, 0.0
  %v61 = vmul.f32 %v59, 0.2
  %v62 = vsel %vm60, %v59, %v61
  %v65 = vunpack.c.l.s4 1983009808
  %v66 = vunpack.c.0.s8 %v65
  %v67 = vlaneseq
  %v68 = vshrl.u32 %v67, 7
  %v69 = vsub.s32 %v66, %v68
  %v70 = vrot.slane %v62, %v69
  %v71 = vcombine.high %v70, %v70
  %v74 = vpack.c.bf16 %v70, %v70
  %v75 = vpack.c.bf16 %v71, %v71
  %v76 = vld [vmem:[%s1] sm:$0xf]
  %v77 = vld [vmem:[%s1 + $0x4] sm:$0xf]
  %v78 = vld [vmem:[%s1 + $0x8] sm:$0xf]
  %v79 = vld [vmem:[%s1 + $0xc] sm:$0xf]
  %v80 = vld [vmem:[%s1 + $0x10] sm:$0xf]
  %v81 = vld [vmem:[%s1 + $0x14] sm:$0xf]
  %v82 = vld [vmem:[%s1 + $0x18] sm:$0xf]
  %v83 = vld [vmem:[%s1 + $0x1c] sm:$0xf]
  %v84 = vld [vmem:[%s1 + $0x20] sm:$0xf]
  %v85 = vld [vmem:[%s1 + $0x24] sm:$0xf]
  %v86 = vld [vmem:[%s1 + $0x28] sm:$0xf]
  %v87 = vld [vmem:[%s1 + $0x2c] sm:$0xf]
  %v88 = vld [vmem:[%s1 + $0x30] sm:$0xf]
  %v89 = vld [vmem:[%s1 + $0x34] sm:$0xf]
  %v90 = vld [vmem:[%s1 + $0x38] sm:$0xf]
  %v91 = vld [vmem:[%s1 + $0x3c] sm:$0xf]
  %v92 = vld [vmem:[%s1 + $0x40] sm:$0xf]
  %v93 = vld [vmem:[%s1 + $0x44] sm:$0xf]
  %v94 = vld [vmem:[%s1 + $0x48] sm:$0xf]
  %v95 = vld [vmem:[%s1 + $0x4c] sm:$0xf]
  %v96 = vld [vmem:[%s1 + $0x50] sm:$0xf]
  %v97 = vld [vmem:[%s1 + $0x54] sm:$0xf]
  %v98 = vld [vmem:[%s1 + $0x58] sm:$0xf]
  %v99 = vld [vmem:[%s1 + $0x5c] sm:$0xf]
  %v100 = vld [vmem:[%s1 + $0x60] sm:$0xf]
  %v101 = vld [vmem:[%s1 + $0x64] sm:$0xf]
  %v102 = vld [vmem:[%s1 + $0x68] sm:$0xf]
  %v103 = vld [vmem:[%s1 + $0x6c] sm:$0xf]
  %v104 = vld [vmem:[%s1 + $0x70] sm:$0xf]
  %v105 = vld [vmem:[%s1 + $0x74] sm:$0xf]
  %v106 = vld [vmem:[%s1 + $0x78] sm:$0xf]
  %v107 = vld [vmem:[%s1 + $0x7c] sm:$0xf]
  %v140 = vunpack.c.l.b16 %v76
  %v141 = vunpack.c.l.b16 %v77
  %v142 = vunpack.c.l.b16 %v78
  %v143 = vunpack.c.l.b16 %v79
  %v144 = vunpack.c.l.b16 %v80
  %v145 = vunpack.c.l.b16 %v81
  %v146 = vunpack.c.l.b16 %v82
  %v147 = vunpack.c.l.b16 %v83
  %v148 = vunpack.c.l.b16 %v84
  %v149 = vunpack.c.l.b16 %v85
  %v150 = vunpack.c.l.b16 %v86
  %v151 = vunpack.c.l.b16 %v87
  %v152 = vunpack.c.l.b16 %v88
  %v153 = vunpack.c.l.b16 %v89
  %v154 = vunpack.c.l.b16 %v90
  %v155 = vunpack.c.l.b16 %v91
  %v156 = vunpack.c.l.b16 %v92
  %v157 = vunpack.c.l.b16 %v93
  %v158 = vunpack.c.l.b16 %v94
  %v159 = vunpack.c.l.b16 %v95
  %v160 = vunpack.c.l.b16 %v96
  %v161 = vunpack.c.l.b16 %v97
  %v162 = vunpack.c.l.b16 %v98
  %v163 = vunpack.c.l.b16 %v99
  %v164 = vunpack.c.l.b16 %v100
  %v165 = vunpack.c.l.b16 %v101
  %v166 = vunpack.c.l.b16 %v102
  %v167 = vunpack.c.l.b16 %v103
  %v168 = vunpack.c.l.b16 %v104
  %v169 = vunpack.c.l.b16 %v105
  %v170 = vunpack.c.l.b16 %v106
  %v171 = vunpack.c.l.b16 %v107
  %v172 = vpack.c.b16 %v141, %v140
  %v173 = vpack.c.b16 %v143, %v142
  %v174 = vpack.c.b16 %v145, %v144
  %v175 = vpack.c.b16 %v147, %v146
  %v176 = vpack.c.b16 %v149, %v148
  %v177 = vpack.c.b16 %v151, %v150
  %v178 = vpack.c.b16 %v153, %v152
  %v179 = vpack.c.b16 %v155, %v154
  %v180 = vpack.c.b16 %v157, %v156
  %v181 = vpack.c.b16 %v159, %v158
  %v182 = vpack.c.b16 %v161, %v160
  %v183 = vpack.c.b16 %v163, %v162
  %v184 = vpack.c.b16 %v165, %v164
  %v185 = vpack.c.b16 %v167, %v166
  %v186 = vpack.c.b16 %v169, %v168
  %v187 = vpack.c.b16 %v171, %v170
  %204 = vmatprep.subr.bf16.mxu0 0
  %205 = vmatpush1.bf16.msra.mxu0 %v172
  %206 = vmatprep.subr.bf16.mxu0 0
  %207 = vmatpush1.bf16.msra.mxu0 %v173
  %208 = vmatprep.subr.bf16.mxu0 0
  %209 = vmatpush1.bf16.msra.mxu0 %v174
  %210 = vmatprep.subr.bf16.mxu0 0
  %211 = vmatpush1.bf16.msra.mxu0 %v175
  %212 = vmatprep.subr.bf16.mxu0 0
  %213 = vmatpush1.bf16.msra.mxu0 %v176
  %214 = vmatprep.subr.bf16.mxu0 0
  %215 = vmatpush1.bf16.msra.mxu0 %v177
  %216 = vmatprep.subr.bf16.mxu0 0
  %217 = vmatpush1.bf16.msra.mxu0 %v178
  %218 = vmatprep.subr.bf16.mxu0 0
  %219 = vmatpush1.bf16.msra.mxu0 %v179
  %220 = vmatprep.subr.bf16.mxu0 0
  %221 = vmatpush1.bf16.msra.mxu0 %v180
  %222 = vmatprep.subr.bf16.mxu0 0
  %223 = vmatpush1.bf16.msra.mxu0 %v181
  %224 = vmatprep.subr.bf16.mxu0 0
  %225 = vmatpush1.bf16.msra.mxu0 %v182
  %226 = vmatprep.subr.bf16.mxu0 0
  %227 = vmatpush1.bf16.msra.mxu0 %v183
  %228 = vmatprep.subr.bf16.mxu0 0
  %229 = vmatpush1.bf16.msra.mxu0 %v184
  %230 = vmatprep.subr.bf16.mxu0 0
  %231 = vmatpush1.bf16.msra.mxu0 %v185
  %232 = vmatprep.subr.bf16.mxu0 0
  %233 = vmatpush1.bf16.msra.mxu0 %v186
  %234 = vmatprep.subr.bf16.mxu0 0
  %235 = vmatpush1.bf16.msra.mxu0 %v187
  %236 = vmatprep.mubr.bf16.mxu0 %v75
  %237 = vmatmul.mubr.bf16.gmra.mrb[0].mxu0 %v74
  %v238 = vpop.f32.mrb[0].mxu0
  %v239 = vadd.f32 0.0, %v238
  %v240 = vpop.f32.mrb[0].mxu0
  %v241 = vpop.f32.mrb[0].mxu0
  %v242 = vpop.f32.mrb[0].mxu0
  %243 = vdwg.mxu0
  %vm244 = vcmask 1024
  %245 = vst.msk [vmem:[%s4] sm:$0x3] %vm244, %v239
  // Predicated region
  $region18: #{discriminator_forward_pallas.9} parent=0 // pred_check
    _
  $region19: #{discriminator_forward_pallas.9} parent=0 // pred_check_branch
    %247 = sbr.rel (0) target = $region21
  $region20: #{discriminator_forward_pallas.9} parent=0 // pred_region
    _
  $region21: #{discriminator_forward_pallas.9} parent=0 // pred_fallthru
    _
  // Predicated region
  $region22: #{discriminator_forward_pallas.9} parent=0 // pred_check
    _
  $region23: #{discriminator_forward_pallas.9} parent=0 // pred_check_branch
    %249 = sbr.rel (0) target = $region25
  $region24: #{discriminator_forward_pallas.9} parent=0 // pred_region
    _
  $region25: #{discriminator_forward_pallas.9} parent=0 // pred_fallthru
    _

// kernel: discriminator_forward_pallas.8
$region0: #{discriminator_forward_pallas.8}
  #allocation0 [shape = 'u32[]', space=smem, size = 0x4, offset = 0x4, fixed_abs, tag = 'smem constant byte address 0x4 - core index']
  #allocation1 [shape = 'u32[144,128]{1,0:T(1,128)}', space=vmem, size = 0x12000, scoped, tag = 'internal scratch']
  %s0 = inlined_call_operand.vmem [shape: bf16[8,512], index: 0, kind: input, shape index: {}]
  %s1 = inlined_call_operand.vmem [shape: bf16[512,64], index: 1, kind: input, shape index: {}]
  %s2 = inlined_call_operand.vmem [shape: f32[1,512], index: 2, kind: input, shape index: {}]
  %s3 = inlined_call_operand.vmem [shape: f32[1,512], index: 3, kind: input, shape index: {}]
  %s4 = inlined_call_operand.vmem [shape: bf16[8,64], index: 4, kind: output, shape index: {0}]
  %s5 = inlined_call_operand.vmem [shape: f32[1,64], index: 5, kind: output, shape index: {1}]
  %s6 = inlined_call_operand.vmem [shape: f32[1,64], index: 6, kind: output, shape index: {2}]
  %7 = xla_tuple %s4, %s5, %s6
  %s8 = sld [smem:[#allocation0]]
  $region46: #{discriminator_forward_pallas.8} parent=0
    _
  %s10 = ssub.s32 1, %s8
  %s11 = scalar_select 0, %s10, %s8
  // Predicated region
  $region2: #{discriminator_forward_pallas.8} parent=0 // pred_check
    _
  $region3: #{discriminator_forward_pallas.8} parent=0 // pred_check_branch
    %13 = sbr.rel (0) target = $region5
  $region4: #{discriminator_forward_pallas.8} parent=0 // pred_region
    _
  $region5: #{discriminator_forward_pallas.8} parent=0 // pred_fallthru
    _
  // Predicated region
  $region6: #{discriminator_forward_pallas.8} parent=0 // pred_check
    _
  $region7: #{discriminator_forward_pallas.8} parent=0 // pred_check_branch
    %15 = sbr.rel (0) target = $region9
  $region8: #{discriminator_forward_pallas.8} parent=0 // pred_region
    _
  $region9: #{discriminator_forward_pallas.8} parent=0 // pred_fallthru
    _
  // Predicated region
  $region10: #{discriminator_forward_pallas.8} parent=0 // pred_check
    _
  $region11: #{discriminator_forward_pallas.8} parent=0 // pred_check_branch
    %17 = sbr.rel (0) target = $region13
  $region12: #{discriminator_forward_pallas.8} parent=0 // pred_region
    _
  $region13: #{discriminator_forward_pallas.8} parent=0 // pred_fallthru
    _
  // Predicated region
  $region14: #{discriminator_forward_pallas.8} parent=0 // pred_check
    _
  $region15: #{discriminator_forward_pallas.8} parent=0 // pred_check_branch
    %19 = sbr.rel (0) target = $region17
  $region16: #{discriminator_forward_pallas.8} parent=0 // pred_region
    _
  $region17: #{discriminator_forward_pallas.8} parent=0 // pred_fallthru
    _
  %v21 = vld [vmem:[%s0] sm:$0xff]
  %v22 = vld [vmem:[%s0 + $0x8] sm:$0xff]
  %v23 = vld [vmem:[%s1] sm:$0xf]
  %v24 = vld [vmem:[%s1 + $0x4] sm:$0xf]
  %v25 = vld [vmem:[%s1 + $0x8] sm:$0xf]
  %v26 = vld [vmem:[%s1 + $0xc] sm:$0xf]
  %v27 = vld [vmem:[%s1 + $0x10] sm:$0xf]
  %v28 = vld [vmem:[%s1 + $0x14] sm:$0xf]
  %v29 = vld [vmem:[%s1 + $0x18] sm:$0xf]
  %v30 = vld [vmem:[%s1 + $0x1c] sm:$0xf]
  %v31 = vld [vmem:[%s1 + $0x20] sm:$0xf]
  %v32 = vld [vmem:[%s1 + $0x24] sm:$0xf]
  %v33 = vld [vmem:[%s1 + $0x28] sm:$0xf]
  %v34 = vld [vmem:[%s1 + $0x2c] sm:$0xf]
  %v35 = vld [vmem:[%s1 + $0x30] sm:$0xf]
  %v36 = vld [vmem:[%s1 + $0x34] sm:$0xf]
  %v37 = vld [vmem:[%s1 + $0x38] sm:$0xf]
  %v38 = vld [vmem:[%s1 + $0x3c] sm:$0xf]
  %v39 = vld [vmem:[%s1 + $0x40] sm:$0xf]
  %v40 = vld [vmem:[%s1 + $0x44] sm:$0xf]
  %v41 = vld [vmem:[%s1 + $0x48] sm:$0xf]
  %v42 = vld [vmem:[%s1 + $0x4c] sm:$0xf]
  %v43 = vld [vmem:[%s1 + $0x50] sm:$0xf]
  %v44 = vld [vmem:[%s1 + $0x54] sm:$0xf]
  %v45 = vld [vmem:[%s1 + $0x58] sm:$0xf]
  %v46 = vld [vmem:[%s1 + $0x5c] sm:$0xf]
  %v47 = vld [vmem:[%s1 + $0x60] sm:$0xf]
  %v48 = vld [vmem:[%s1 + $0x64] sm:$0xf]
  %v49 = vld [vmem:[%s1 + $0x68] sm:$0xf]
  %v50 = vld [vmem:[%s1 + $0x6c] sm:$0xf]
  %v51 = vld [vmem:[%s1 + $0x70] sm:$0xf]
  %v52 = vld [vmem:[%s1 + $0x74] sm:$0xf]
  %v53 = vld [vmem:[%s1 + $0x78] sm:$0xf]
  %v54 = vld [vmem:[%s1 + $0x7c] sm:$0xf]
  %v55 = vld [vmem:[%s1 + $0x80] sm:$0xf]
  %v56 = vld [vmem:[%s1 + $0x84] sm:$0xf]
  %v57 = vld [vmem:[%s1 + $0x88] sm:$0xf]
  %v58 = vld [vmem:[%s1 + $0x8c] sm:$0xf]
  %v59 = vld [vmem:[%s1 + $0x90] sm:$0xf]
  %v60 = vld [vmem:[%s1 + $0x94] sm:$0xf]
  %v61 = vld [vmem:[%s1 + $0x98] sm:$0xf]
  %v62 = vld [vmem:[%s1 + $0x9c] sm:$0xf]
  %v63 = vld [vmem:[%s1 + $0xa0] sm:$0xf]
  %v64 = vld [vmem:[%s1 + $0xa4] sm:$0xf]
  %v65 = vld [vmem:[%s1 + $0xa8] sm:$0xf]
  %v66 = vld [vmem:[%s1 + $0xac] sm:$0xf]
  %v67 = vld [vmem:[%s1 + $0xb0] sm:$0xf]
  %v68 = vld [vmem:[%s1 + $0xb4] sm:$0xf]
  %v69 = vld [vmem:[%s1 + $0xb8] sm:$0xf]
  %v70 = vld [vmem:[%s1 + $0xbc] sm:$0xf]
  %v71 = vld [vmem:[%s1 + $0xc0] sm:$0xf]
  %v72 = vld [vmem:[%s1 + $0xc4] sm:$0xf]
  %v73 = vld [vmem:[%s1 + $0xc8] sm:$0xf]
  %v74 = vld [vmem:[%s1 + $0xcc] sm:$0xf]
  %v75 = vld [vmem:[%s1 + $0xd0] sm:$0xf]
  %v76 = vld [vmem:[%s1 + $0xd4] sm:$0xf]
  %v77 = vld [vmem:[%s1 + $0xd8] sm:$0xf]
  %v78 = vld [vmem:[%s1 + $0xdc] sm:$0xf]
  %v79 = vld [vmem:[%s1 + $0xe0] sm:$0xf]
  %v80 = vld [vmem:[%s1 + $0xe4] sm:$0xf]
  %v81 = vld [vmem:[%s1 + $0xe8] sm:$0xf]
  %v82 = vld [vmem:[%s1 + $0xec] sm:$0xf]
  %v83 = vld [vmem:[%s1 + $0xf0] sm:$0xf]
  %v84 = vld [vmem:[%s1 + $0xf4] sm:$0xf]
  %v85 = vld [vmem:[%s1 + $0xf8] sm:$0xf]
  %v86 = vld [vmem:[%s1 + $0xfc] sm:$0xf]
  %v89 = vunpack.c.l.b16 %v21
  %v90 = vunpack.c.h.b16 %v21
  %v91 = vunpack.c.l.b16 %v22
  %v92 = vunpack.c.h.b16 %v22
  %v93 = vpack.c.b16 %v89, %v89
  %v94 = vpack.c.b16 %v90, %v90
  %v95 = vpack.c.b16 %v91, %v91
  %v96 = vpack.c.b16 %v92, %v92
  %v165 = vunpack.c.l.b16 %v23
  %v166 = vunpack.c.l.b16 %v24
  %v167 = vunpack.c.l.b16 %v25
  %v168 = vunpack.c.l.b16 %v26
  %v169 = vunpack.c.l.b16 %v27
  %v170 = vunpack.c.l.b16 %v28
  %v171 = vunpack.c.l.b16 %v29
  %v172 = vunpack.c.l.b16 %v30
  %v173 = vunpack.c.l.b16 %v31
  %v174 = vunpack.c.l.b16 %v32
  %v175 = vunpack.c.l.b16 %v33
  %v176 = vunpack.c.l.b16 %v34
  %v177 = vunpack.c.l.b16 %v35
  %v178 = vunpack.c.l.b16 %v36
  %v179 = vunpack.c.l.b16 %v37
  %v180 = vunpack.c.l.b16 %v38
  %v181 = vunpack.c.l.b16 %v39
  %v182 = vunpack.c.l.b16 %v40
  %v183 = vunpack.c.l.b16 %v41
  %v184 = vunpack.c.l.b16 %v42
  %v185 = vunpack.c.l.b16 %v43
  %v186 = vunpack.c.l.b16 %v44
  %v187 = vunpack.c.l.b16 %v45
  %v188 = vunpack.c.l.b16 %v46
  %v189 = vunpack.c.l.b16 %v47
  %v190 = vunpack.c.l.b16 %v48
  %v191 = vunpack.c.l.b16 %v49
  %v192 = vunpack.c.l.b16 %v50
  %v193 = vunpack.c.l.b16 %v51
  %v194 = vunpack.c.l.b16 %v52
  %v195 = vunpack.c.l.b16 %v53
  %v196 = vunpack.c.l.b16 %v54
  %v197 = vunpack.c.l.b16 %v55
  %v198 = vunpack.c.l.b16 %v56
  %v199 = vunpack.c.l.b16 %v57
  %v200 = vunpack.c.l.b16 %v58
  %v201 = vunpack.c.l.b16 %v59
  %v202 = vunpack.c.l.b16 %v60
  %v203 = vunpack.c.l.b16 %v61
  %v204 = vunpack.c.l.b16 %v62
  %v205 = vunpack.c.l.b16 %v63
  %v206 = vunpack.c.l.b16 %v64
  %v207 = vunpack.c.l.b16 %v65
  %v208 = vunpack.c.l.b16 %v66
  %v209 = vunpack.c.l.b16 %v67
  %v210 = vunpack.c.l.b16 %v68
  %v211 = vunpack.c.l.b16 %v69
  %v212 = vunpack.c.l.b16 %v70
  %v213 = vunpack.c.l.b16 %v71
  %v214 = vunpack.c.l.b16 %v72
  %v215 = vunpack.c.l.b16 %v73
  %v216 = vunpack.c.l.b16 %v74
  %v217 = vunpack.c.l.b16 %v75
  %v218 = vunpack.c.l.b16 %v76
  %v219 = vunpack.c.l.b16 %v77
  %v220 = vunpack.c.l.b16 %v78
  %v221 = vunpack.c.l.b16 %v79
  %v222 = vunpack.c.l.b16 %v80
  %v223 = vunpack.c.l.b16 %v81
  %v224 = vunpack.c.l.b16 %v82
  %v225 = vunpack.c.l.b16 %v83
  %v226 = vunpack.c.l.b16 %v84
  %v227 = vunpack.c.l.b16 %v85
  %v228 = vunpack.c.l.b16 %v86
  %v229 = vpack.c.b16 %v166, %v165
  %v230 = vpack.c.b16 %v168, %v167
  %v231 = vpack.c.b16 %v170, %v169
  %v232 = vpack.c.b16 %v172, %v171
  %v233 = vpack.c.b16 %v174, %v173
  %v234 = vpack.c.b16 %v176, %v175
  %v235 = vpack.c.b16 %v178, %v177
  %v236 = vpack.c.b16 %v180, %v179
  %v237 = vpack.c.b16 %v182, %v181
  %v238 = vpack.c.b16 %v184, %v183
  %v239 = vpack.c.b16 %v186, %v185
  %v240 = vpack.c.b16 %v188, %v187
  %v241 = vpack.c.b16 %v190, %v189
  %v242 = vpack.c.b16 %v192, %v191
  %v243 = vpack.c.b16 %v194, %v193
  %v244 = vpack.c.b16 %v196, %v195
  %v245 = vpack.c.b16 %v198, %v197
  %v246 = vpack.c.b16 %v200, %v199
  %v247 = vpack.c.b16 %v202, %v201
  %v248 = vpack.c.b16 %v204, %v203
  %v249 = vpack.c.b16 %v206, %v205
  %v250 = vpack.c.b16 %v208, %v207
  %v251 = vpack.c.b16 %v210, %v209
  %v252 = vpack.c.b16 %v212, %v211
  %v253 = vpack.c.b16 %v214, %v213
  %v254 = vpack.c.b16 %v216, %v215
  %v255 = vpack.c.b16 %v218, %v217
  %v256 = vpack.c.b16 %v220, %v219
  %v257 = vpack.c.b16 %v222, %v221
  %v258 = vpack.c.b16 %v224, %v223
  %v259 = vpack.c.b16 %v226, %v225
  %v260 = vpack.c.b16 %v228, %v227
  %293 = vmatprep.subr.bf16.mxu0 0
  %294 = vmatpush1.bf16.msra.mxu0 %v229
  %295 = vmatprep.subr.bf16.mxu0 0
  %296 = vmatpush1.bf16.msra.mxu0 %v230
  %297 = vmatprep.subr.bf16.mxu0 0
  %298 = vmatpush1.bf16.msra.mxu0 %v231
  %299 = vmatprep.subr.bf16.mxu0 0
  %300 = vmatpush1.bf16.msra.mxu0 %v232
  %301 = vmatprep.subr.bf16.mxu0 0
  %302 = vmatpush1.bf16.msra.mxu0 %v233
  %303 = vmatprep.subr.bf16.mxu0 0
  %304 = vmatpush1.bf16.msra.mxu0 %v234
  %305 = vmatprep.subr.bf16.mxu0 0
  %306 = vmatpush1.bf16.msra.mxu0 %v235
  %307 = vmatprep.subr.bf16.mxu0 0
  %308 = vmatpush1.bf16.msra.mxu0 %v236
  %309 = vmatprep.subr.bf16.mxu0 0
  %310 = vmatpush1.bf16.msra.mxu0 %v237
  %311 = vmatprep.subr.bf16.mxu0 0
  %312 = vmatpush1.bf16.msra.mxu0 %v238
  %313 = vmatprep.subr.bf16.mxu0 0
  %314 = vmatpush1.bf16.msra.mxu0 %v239
  %315 = vmatprep.subr.bf16.mxu0 0
  %316 = vmatpush1.bf16.msra.mxu0 %v240
  %317 = vmatprep.subr.bf16.mxu0 0
  %318 = vmatpush1.bf16.msra.mxu0 %v241
  %319 = vmatprep.subr.bf16.mxu0 0
  %320 = vmatpush1.bf16.msra.mxu0 %v242
  %321 = vmatprep.subr.bf16.mxu0 0
  %322 = vmatpush1.bf16.msra.mxu0 %v243
  %323 = vmatprep.subr.bf16.mxu0 0
  %324 = vmatpush1.bf16.msra.mxu0 %v244
  %325 = vmatprep.mubr.bf16.mxu0 %v94
  %326 = vmatmul.mubr.bf16.gmra.mrb[0].mxu0 %v93
  %v327 = vpop.f32.mrb[0].mxu0
  %v328 = vadd.f32 0.0, %v327
  %v329 = vpop.f32.mrb[0].mxu0
  %v330 = vpop.f32.mrb[0].mxu0
  %v331 = vpop.f32.mrb[0].mxu0
  %332 = vdwg.mxu0
  %333 = vmatprep.subr.bf16.mxu0 0
  %334 = vmatpush1.bf16.msra.mxu0 %v245
  %335 = vmatprep.subr.bf16.mxu0 0
  %336 = vmatpush1.bf16.msra.mxu0 %v246
  %337 = vmatprep.subr.bf16.mxu0 0
  %338 = vmatpush1.bf16.msra.mxu0 %v247
  %339 = vmatprep.subr.bf16.mxu0 0
  %340 = vmatpush1.bf16.msra.mxu0 %v248
  %341 = vmatprep.subr.bf16.mxu0 0
  %342 = vmatpush1.bf16.msra.mxu0 %v249
  %343 = vmatprep.subr.bf16.mxu0 0
  %344 = vmatpush1.bf16.msra.mxu0 %v250
  %345 = vmatprep.subr.bf16.mxu0 0
  %346 = vmatpush1.bf16.msra.mxu0 %v251
  %347 = vmatprep.subr.bf16.mxu0 0
  %348 = vmatpush1.bf16.msra.mxu0 %v252
  %349 = vmatprep.subr.bf16.mxu0 0
  %350 = vmatpush1.bf16.msra.mxu0 %v253
  %351 = vmatprep.subr.bf16.mxu0 0
  %352 = vmatpush1.bf16.msra.mxu0 %v254
  %353 = vmatprep.subr.bf16.mxu0 0
  %354 = vmatpush1.bf16.msra.mxu0 %v255
  %355 = vmatprep.subr.bf16.mxu0 0
  %356 = vmatpush1.bf16.msra.mxu0 %v256
  %357 = vmatprep.subr.bf16.mxu0 0
  %358 = vmatpush1.bf16.msra.mxu0 %v257
  %359 = vmatprep.subr.bf16.mxu0 0
  %360 = vmatpush1.bf16.msra.mxu0 %v258
  %361 = vmatprep.subr.bf16.mxu0 0
  %362 = vmatpush1.bf16.msra.mxu0 %v259
  %363 = vmatprep.subr.bf16.mxu0 0
  %364 = vmatpush1.bf16.msra.mxu0 %v260
  %365 = vmatprep.mubr.bf16.mxu0 %v96
  %366 = vmatmul.mubr.bf16.gmra.mrb[0].mxu0 %v95
  %v367 = vpop.f32.mrb[0].mxu0
  %v368 = vadd.f32 %v328, %v367
  %v369 = vpop.f32.mrb[0].mxu0
  %v370 = vpop.f32.mrb[0].mxu0
  %v371 = vpop.f32.mrb[0].mxu0
  %372 = vdwg.mxu0
  %v373 = vpack.c.bf16 %v368, %v368
  %vm374 = vcmask 519168
  %375 = vst.msk [vmem:[%s4] sm:$0xf] %vm374, %v373
  %p376 = scmp.eq.s32.totalorder 0, 0
  // Predicated region
  $region18: #{discriminator_forward_pallas.8} parent=0 // pred_check
    %p377 = pneg %p376
  $region19: #{discriminator_forward_pallas.8} parent=0 // pred_check_branch
    %379 = sbr.rel (%p377) target = $region21
  $region20: #{discriminator_forward_pallas.8} parent=0 // pred_region
    %vm380 = vcmask 516096
    %381 = vst.msk [vmem:[%s5] sm:$0x1] %vm380, 0.0
    %382 = vst.msk [vmem:[%s6] sm:$0x1] %vm380, 0.0
  $region21: #{discriminator_forward_pallas.8} parent=0 // pred_fallthru
    _
  %v383 = vld [vmem:[%s5] sm:$0x1]
  %vm384 = vcmask 523264
  %v385 = vsel %vm384, %v368, 0.0
  %v386 = vrot.slane %v385, 4
  %v387 = vadd.f32 %v385, %v386
  %v388 = vrot.slane %v387, 2
  %v389 = vadd.f32 %v387, %v388
  %v390 = vrot.slane %v389, 1
  %v391 = vadd.f32 %v389, %v390
  %v392 = vadd.f32 %v383, %v391
  %vm393 = vcmask 516096
  %394 = vst.msk [vmem:[%s5] sm:$0x1] %vm393, %v392
  %v395 = vld [vmem:[%s6] sm:$0x1]
  %v396 = vmul.f32 %v368, %v368
  %v397 = vsel %vm384, %v396, 0.0
  %v398 = vrot.slane %v397, 4
  %v399 = vadd.f32 %v397, %v398
  %v400 = vrot.slane %v399, 2
  %v401 = vadd.f32 %v399, %v400
  %v402 = vrot.slane %v401, 1
  %v403 = vadd.f32 %v401, %v402
  %v404 = vadd.f32 %v395, %v403
  %405 = vst.msk [vmem:[%s6] sm:$0x1] %vm393, %v404
  // Predicated region
  $region22: #{discriminator_forward_pallas.8} parent=0 // pred_check
    _
  $region23: #{discriminator_forward_pallas.8} parent=0 // pred_check_branch
    %407 = sbr.rel (0) target = $region25
  $region24: #{discriminator_forward_pallas.8} parent=0 // pred_region
    _
  $region25: #{discriminator_forward_pallas.8} parent=0 // pred_fallthru
    _
  // Predicated region
  $region26: #{discriminator_forward_pallas.8} parent=0 // pred_check
    _
  $region27: #{discriminator_forward_pallas.8} parent=0 // pred_check_branch
    %409 = sbr.rel (0) target = $region29
  $region28: #{discriminator_forward_pallas.8} parent=0 // pred_region
    _
  $region29: #{discriminator_forward_pallas.8} parent=0 // pred_fallthru
    _
  // Predicated region
  $region30: #{discriminator_forward_pallas.8} parent=0 // pred_check
    _
  $region31: #{discriminator_forward_pallas.8} parent=0 // pred_check_branch
    %411 = sbr.rel (0) target = $region33
  $region32: #{discriminator_forward_pallas.8} parent=0 // pred_region
    _
  $region33: #{discriminator_forward_pallas.8} parent=0 // pred_fallthru
    _
  // Predicated region
  $region34: #{discriminator_forward_pallas.8} parent=0 // pred_check
    _
  $region35: #{discriminator_forward_pallas.8} parent=0 // pred_check_branch
    %413 = sbr.rel (0) target = $region37
  $region36: #{discriminator_forward_pallas.8} parent=0 // pred_region
    _
  $region37: #{discriminator_forward_pallas.8} parent=0 // pred_fallthru
    _
  // Predicated region
  $region38: #{discriminator_forward_pallas.8} parent=0 // pred_check
    _
  $region39: #{discriminator_forward_pallas.8} parent=0 // pred_check_branch
    %415 = sbr.rel (0) target = $region41
  $region40: #{discriminator_forward_pallas.8} parent=0 // pred_region
    _
  $region41: #{discriminator_forward_pallas.8} parent=0 // pred_fallthru
    _
  // Predicated region
  $region42: #{discriminator_forward_pallas.8} parent=0 // pred_check
    _
  $region43: #{discriminator_forward_pallas.8} parent=0 // pred_check_branch
    %417 = sbr.rel (0) target = $region45
  $region44: #{discriminator_forward_pallas.8} parent=0 // pred_region
    _
  $region45: #{discriminator_forward_pallas.8} parent=0 // pred_fallthru
    _

</llo_original>
